<compile_context>
chip_gen: v7x
topology: tpu7x:2x2x1
jax: 0.10.0
libtpu: 0.0.40
codegen_flags: <defaults>
</compile_context>

<pallas_src>
import jax
import jax.numpy as jnp
from jax.experimental import pallas as pl
from jax.experimental.pallas import tpu as pltpu


def make_lstm_kernel(T, B):
    """Builds the fused LSTM(+head) kernel for static (T, B)."""

    def lstm_kernel(x_ref, wih_ref, whh_ref, b_ref, wout_ref, bout_ref,
                    o_ref, gx_scr, hs_scr):
        H = whh_ref.shape[0]

        # (1) Input projection for ALL timesteps in one MXU call:
        #     (T*B, D) @ (D, 4H) + b  ->  (T*B, 4H), f32 accumulation.
        gx_scr[...] = (
            jnp.dot(x_ref[...], wih_ref[...],
                    preferred_element_type=jnp.float32)
            + b_ref[...])

        h = jnp.zeros((B, H), jnp.float32)
        c = jnp.zeros((B, H), jnp.float32)

        # (2) Sequential recurrence, statically unrolled (T small & static).
        #     Per step: one (B, H) @ (H, 4H) matmul + f32 elementwise.
        for t in range(T):
            gates = gx_scr[pl.ds(t * B, B), :] + jnp.dot(
                h.astype(jnp.bfloat16), whh_ref[...],
                preferred_element_type=jnp.float32)           # (B, 4H) f32

            # PyTorch gate order: i, f, g, o.  H=128 keeps the slices
            # lane-tile aligned (no materialized copies).
            i_g = jax.nn.sigmoid(gates[:, 0 * H:1 * H])
            f_g = jax.nn.sigmoid(gates[:, 1 * H:2 * H])
            g_g = jnp.tanh(gates[:, 2 * H:3 * H])
            o_g = jax.nn.sigmoid(gates[:, 3 * H:4 * H])

            c = f_g * c + i_g * g_g
            h = o_g * jnp.tanh(c)

            # Lane-dense (B, 128) store of this step's hidden state.
            hs_scr[pl.ds(t * B, B), :] = h

        # (3) Linear head once over the whole sequence: (T*B, H) @ (H, 1).
        o_ref[...] = (
            jnp.dot(hs_scr[...], wout_ref[...],
                    preferred_element_type=jnp.float32)
            + bout_ref[...])

    return lstm_kernel


def rnn_forward(x, params):
    """x: (B, T, D) float32.  Returns (B, T, 1) float32."""
    B, T, D = x.shape
    wih_t, whh_t, b, wout_t, bout = params
    H = whh_t.shape[0]
    G = 4 * H
    TB = T * B

    # Time-major, flattened so row index = t*B + b; cast to bf16 for the MXU
    # (halves the HBM->VMEM bytes; accumulation stays f32 in-kernel).
    x_tm = jnp.transpose(x, (1, 0, 2)).reshape(TB, D).astype(jnp.bfloat16)

    y = pl.pallas_call(
        make_lstm_kernel(T, B),
        out_shape=jax.ShapeDtypeStruct((TB, 1), jnp.float32),
        grid_spec=pltpu.PrefetchScalarGridSpec(
            num_scalar_prefetch=0,
            grid=(1,),                                   # single invocation
            in_specs=[
                pl.BlockSpec((TB, D), lambda i: (0, 0)),  # x, time-major flat
                pl.BlockSpec((D, G), lambda i: (0, 0)),   # W_ih^T (bf16)
                pl.BlockSpec((H, G), lambda i: (0, 0)),   # W_hh^T (bf16)
                pl.BlockSpec((1, G), lambda i: (0, 0)),   # b_ih + b_hh (f32)
                pl.BlockSpec((H, 1), lambda i: (0, 0)),   # W_out^T (f32)
                pl.BlockSpec((1, 1), lambda i: (0, 0)),   # b_out (f32)
            ],
            out_specs=pl.BlockSpec((TB, 1), lambda i: (0, 0)),
            scratch_shapes=[
                pltpu.VMEM((TB, G), jnp.float32),   # precomputed input gates
                pltpu.VMEM((TB, H), jnp.float32),   # hidden-state sequence
            ],
        ),
        compiler_params=pltpu.CompilerParams(
            dimension_semantics=("arbitrary",)),
    )(x_tm, wih_t, whh_t, b, wout_t, bout)

    # (T*B, 1) -> (T, B, 1) -> (B, T, 1)
    return jnp.transpose(y.reshape(T, B, 1), (1, 0, 2))


def init_params(key, input_size, hidden_size):
    """Deterministic init mirroring nn.LSTM / nn.Linear parameter shapes."""
    H, D = hidden_size, input_size
    k = 1.0 / jnp.sqrt(H)
    ks = jax.random.split(key, 6)
    w_ih = jax.random.uniform(ks[0], (4 * H, D), jnp.float32, -k, k)
    w_hh = jax.random.uniform(ks[1], (4 * H, H), jnp.float32, -k, k)
    b_ih = jax.random.uniform(ks[2], (4 * H,), jnp.float32, -k, k)
    b_hh = jax.random.uniform(ks[3], (4 * H,), jnp.float32, -k, k)
    w_out = jax.random.uniform(ks[4], (1, H), jnp.float32, -k, k)
    b_out = jax.random.uniform(ks[5], (1,), jnp.float32, -k, k)

    # Pre-transpose for (x @ W^T) form; MXU operands in bf16, biases/head f32.
    wih_t = w_ih.T.astype(jnp.bfloat16)               # (D, 4H)
    whh_t = w_hh.T.astype(jnp.bfloat16)               # (H, 4H)
    b = (b_ih + b_hh)[None, :]                        # (1, 4H) f32
    wout_t = w_out.T                                  # (H, 1)  f32
    bout = b_out[None, :]                             # (1, 1)  f32
    return (wih_t, whh_t, b, wout_t, bout)


def reference_forward(x, params):
    """Pure-JAX reference of the same LSTM + Linear (same bf16 MXU operands,
    f32 accumulation / elementwise), for a sanity check."""
    wih_t, whh_t, b, wout_t, bout = params
    B, T, D = x.shape
    H = whh_t.shape[0]
    h0 = jnp.zeros((B, H), jnp.float32)
    c0 = jnp.zeros((B, H), jnp.float32)
    xb = x.astype(jnp.bfloat16)

    def step(carry, x_t):
        h, c = carry
        gates = (jnp.dot(x_t, wih_t, preferred_element_type=jnp.float32)
                 + jnp.dot(h.astype(jnp.bfloat16), whh_t,
                           preferred_element_type=jnp.float32)
                 + b)
        i = jax.nn.sigmoid(gates[:, 0 * H:1 * H])
        f = jax.nn.sigmoid(gates[:, 1 * H:2 * H])
        g = jnp.tanh(gates[:, 2 * H:3 * H])
        o = jax.nn.sigmoid(gates[:, 3 * H:4 * H])
        c = f * c + i * g
        h = o * jnp.tanh(c)
        y = jnp.dot(h, wout_t, preferred_element_type=jnp.float32) + bout
        return (h, c), y

    (_, _), ys = jax.lax.scan(step, (h0, c0), jnp.transpose(xb, (1, 0, 2)))
    return jnp.transpose(ys, (1, 0, 2))               # (B, T, 1)


if __name__ == "__main__":
    B, T, D, H = 2, 8, 16, 128

    key = jax.random.PRNGKey(0)
    k_x, k_p = jax.random.split(key)
    x = jax.random.normal(k_x, (B, T, D), jnp.float32)
    params = init_params(k_p, D, H)

    out = rnn_forward(x, params)
    jax.block_until_ready(out)

    ref = reference_forward(x, params)
    assert out.shape == (B, T, 1)
    assert jnp.allclose(out, ref, atol=1e-4, rtol=1e-4)

    print("KERNEL_OK")
</pallas_src>

<mosaic_0001>
module attributes {stable_mosaic.version = 11 : i64} {
  func.func @lstm_kernel(%arg0: i32, %arg1: memref<16x16xbf16, #tpu.memory_space<vmem>>, %arg2: memref<16x512xbf16, #tpu.memory_space<vmem>>, %arg3: memref<128x512xbf16, #tpu.memory_space<vmem>>, %arg4: memref<1x512xf32, #tpu.memory_space<vmem>>, %arg5: memref<128x1xf32, #tpu.memory_space<vmem>>, %arg6: memref<1x1xf32, #tpu.memory_space<vmem>>, %arg7: memref<16x1xf32, #tpu.memory_space<vmem>>, %arg8: memref<16x512xf32, #tpu.memory_space<vmem>>, %arg9: memref<16x128xf32, #tpu.memory_space<vmem>>) attributes {dimension_semantics = [#tpu.dimension_semantics<arbitrary>], iteration_bounds = array<i64: 1>, scalar_prefetch = 0 : i64, scratch_operands = 2 : i64, tpu.core_type = #tpu.core_type<tc>, window_params = [{pipeline_mode = #tpu.pipeline_mode<synchronous>, transform_indices = @transform_0, window_bounds = array<i64: 16, 16>}, {pipeline_mode = #tpu.pipeline_mode<synchronous>, transform_indices = @transform_1, window_bounds = array<i64: 16, 512>}, {pipeline_mode = #tpu.pipeline_mode<synchronous>, transform_indices = @transform_2, window_bounds = array<i64: 128, 512>}, {pipeline_mode = #tpu.pipeline_mode<synchronous>, transform_indices = @transform_3, window_bounds = array<i64: 1, 512>}, {pipeline_mode = #tpu.pipeline_mode<synchronous>, transform_indices = @transform_4, window_bounds = array<i64: 128, 1>}, {pipeline_mode = #tpu.pipeline_mode<synchronous>, transform_indices = @transform_5, window_bounds = array<i64: 1, 1>}, {pipeline_mode = #tpu.pipeline_mode<synchronous>, transform_indices = @transform_6, window_bounds = array<i64: 16, 1>}]} {
    %c0 = arith.constant 0 : index
    %c0_0 = arith.constant 0 : index
    %0 = vector.load %arg1[%c0, %c0_0] : memref<16x16xbf16, #tpu.memory_space<vmem>>, vector<16x16xbf16>
    %c0_1 = arith.constant 0 : index
    %c0_2 = arith.constant 0 : index
    %1 = vector.load %arg2[%c0_1, %c0_2] : memref<16x512xbf16, #tpu.memory_space<vmem>>, vector<16x512xbf16>
    %cst = arith.constant dense<0.000000e+00> : vector<16x512xf32>
    %2 = tpu.matmul %0, %1, %cst {dimension_numbers = #tpu.dot_dimension_numbers<[1], [0], [0], [1], [0, 0, 1, 1], [], []>} : vector<16x16xbf16>, vector<16x512xbf16>, vector<16x512xf32> -> vector<16x512xf32>
    %c0_3 = arith.constant 0 : index
    %c0_4 = arith.constant 0 : index
    %3 = vector.load %arg4[%c0_3, %c0_4] : memref<1x512xf32, #tpu.memory_space<vmem>>, vector<1x512xf32>
    %4 = vector.broadcast %3 : vector<1x512xf32> to vector<16x512xf32>
    %5 = arith.addf %2, %4 : vector<16x512xf32>
    %c0_5 = arith.constant 0 : index
    %c0_6 = arith.constant 0 : index
    %6 = vector.load %arg8[%c0_5, %c0_6] : memref<16x512xf32, #tpu.memory_space<vmem>>, vector<16x512xf32>
    tpu.vector_store %arg8[%c0_5, %c0_6], %5 {strides = array<i32>} : memref<16x512xf32, #tpu.memory_space<vmem>>, vector<16x512xf32>,
    %cst_7 = arith.constant 0.000000e+00 : f32
    %7 = vector.broadcast %cst_7 : f32 to vector<2x128xf32>
    %cst_8 = arith.constant 0.000000e+00 : f32
    %8 = vector.broadcast %cst_8 : f32 to vector<2x128xf32>
    %c0_9 = arith.constant 0 : index
    %c0_10 = arith.constant 0 : index
    %9 = vector.load %arg8[%c0_9, %c0_10] : memref<16x512xf32, #tpu.memory_space<vmem>>, vector<2x512xf32>
    %10 = arith.truncf %7 : vector<2x128xf32> to vector<2x128xbf16>
    %c0_11 = arith.constant 0 : index
    %c0_12 = arith.constant 0 : index
    %11 = vector.load %arg3[%c0_11, %c0_12] : memref<128x512xbf16, #tpu.memory_space<vmem>>, vector<128x512xbf16>
    %cst_13 = arith.constant dense<0.000000e+00> : vector<2x512xf32>
    %12 = tpu.matmul %10, %11, %cst_13 {dimension_numbers = #tpu.dot_dimension_numbers<[1], [0], [0], [1], [0, 0, 1, 1], [], []>} : vector<2x128xbf16>, vector<128x512xbf16>, vector<2x512xf32> -> vector<2x512xf32>
    %13 = arith.addf %9, %12 : vector<2x512xf32>
    %14 = vector.extract_strided_slice %13 {offsets = [0, 0], sizes = [2, 128], strides = [1, 1]} : vector<2x512xf32> to vector<2x128xf32>
    %15 = arith.negf %14 : vector<2x128xf32>
    %16 = math.exp %15 : vector<2x128xf32>
    %cst_14 = arith.constant 1.000000e+00 : f32
    %17 = vector.broadcast %cst_14 : f32 to vector<2x128xf32>
    %18 = arith.addf %17, %16 : vector<2x128xf32>
    %19 = arith.divf %17, %18 : vector<2x128xf32>
    %20 = vector.extract_strided_slice %13 {offsets = [0, 128], sizes = [2, 128], strides = [1, 1]} : vector<2x512xf32> to vector<2x128xf32>
    %21 = arith.negf %20 : vector<2x128xf32>
    %22 = math.exp %21 : vector<2x128xf32>
    %cst_15 = arith.constant 1.000000e+00 : f32
    %23 = vector.broadcast %cst_15 : f32 to vector<2x128xf32>
    %24 = arith.addf %23, %22 : vector<2x128xf32>
    %25 = arith.divf %23, %24 : vector<2x128xf32>
    %26 = vector.extract_strided_slice %13 {offsets = [0, 256], sizes = [2, 128], strides = [1, 1]} : vector<2x512xf32> to vector<2x128xf32>
    %27 = math.tanh %26 : vector<2x128xf32>
    %28 = vector.extract_strided_slice %13 {offsets = [0, 384], sizes = [2, 128], strides = [1, 1]} : vector<2x512xf32> to vector<2x128xf32>
    %29 = arith.negf %28 : vector<2x128xf32>
    %30 = math.exp %29 : vector<2x128xf32>
    %cst_16 = arith.constant 1.000000e+00 : f32
    %31 = vector.broadcast %cst_16 : f32 to vector<2x128xf32>
    %32 = arith.addf %31, %30 : vector<2x128xf32>
    %33 = arith.divf %31, %32 : vector<2x128xf32>
    %34 = arith.mulf %25, %8 : vector<2x128xf32>
    %35 = arith.mulf %19, %27 : vector<2x128xf32>
    %36 = arith.addf %34, %35 : vector<2x128xf32>
    %37 = math.tanh %36 : vector<2x128xf32>
    %38 = arith.mulf %33, %37 : vector<2x128xf32>
    %c0_17 = arith.constant 0 : index
    %c0_18 = arith.constant 0 : index
    %39 = vector.load %arg9[%c0_17, %c0_18] : memref<16x128xf32, #tpu.memory_space<vmem>>, vector<2x128xf32>
    tpu.vector_store %arg9[%c0_17, %c0_18], %38 {strides = array<i32>} : memref<16x128xf32, #tpu.memory_space<vmem>>, vector<2x128xf32>,
    %c2 = arith.constant 2 : index
    %c0_19 = arith.constant 0 : index
    %40 = vector.load %arg8[%c2, %c0_19] : memref<16x512xf32, #tpu.memory_space<vmem>>, vector<2x512xf32>
    %41 = arith.truncf %38 : vector<2x128xf32> to vector<2x128xbf16>
    %c0_20 = arith.constant 0 : index
    %c0_21 = arith.constant 0 : index
    %42 = vector.load %arg3[%c0_20, %c0_21] : memref<128x512xbf16, #tpu.memory_space<vmem>>, vector<128x512xbf16>
    %cst_22 = arith.constant dense<0.000000e+00> : vector<2x512xf32>
    %43 = tpu.matmul %41, %42, %cst_22 {dimension_numbers = #tpu.dot_dimension_numbers<[1], [0], [0], [1], [0, 0, 1, 1], [], []>} : vector<2x128xbf16>, vector<128x512xbf16>, vector<2x512xf32> -> vector<2x512xf32>
    %44 = arith.addf %40, %43 : vector<2x512xf32>
    %45 = vector.extract_strided_slice %44 {offsets = [0, 0], sizes = [2, 128], strides = [1, 1]} : vector<2x512xf32> to vector<2x128xf32>
    %46 = arith.negf %45 : vector<2x128xf32>
    %47 = math.exp %46 : vector<2x128xf32>
    %cst_23 = arith.constant 1.000000e+00 : f32
    %48 = vector.broadcast %cst_23 : f32 to vector<2x128xf32>
    %49 = arith.addf %48, %47 : vector<2x128xf32>
    %50 = arith.divf %48, %49 : vector<2x128xf32>
    %51 = vector.extract_strided_slice %44 {offsets = [0, 128], sizes = [2, 128], strides = [1, 1]} : vector<2x512xf32> to vector<2x128xf32>
    %52 = arith.negf %51 : vector<2x128xf32>
    %53 = math.exp %52 : vector<2x128xf32>
    %cst_24 = arith.constant 1.000000e+00 : f32
    %54 = vector.broadcast %cst_24 : f32 to vector<2x128xf32>
    %55 = arith.addf %54, %53 : vector<2x128xf32>
    %56 = arith.divf %54, %55 : vector<2x128xf32>
    %57 = vector.extract_strided_slice %44 {offsets = [0, 256], sizes = [2, 128], strides = [1, 1]} : vector<2x512xf32> to vector<2x128xf32>
    %58 = math.tanh %57 : vector<2x128xf32>
    %59 = vector.extract_strided_slice %44 {offsets = [0, 384], sizes = [2, 128], strides = [1, 1]} : vector<2x512xf32> to vector<2x128xf32>
    %60 = arith.negf %59 : vector<2x128xf32>
    %61 = math.exp %60 : vector<2x128xf32>
    %cst_25 = arith.constant 1.000000e+00 : f32
    %62 = vector.broadcast %cst_25 : f32 to vector<2x128xf32>
    %63 = arith.addf %62, %61 : vector<2x128xf32>
    %64 = arith.divf %62, %63 : vector<2x128xf32>
    %65 = arith.mulf %56, %36 : vector<2x128xf32>
    %66 = arith.mulf %50, %58 : vector<2x128xf32>
    %67 = arith.addf %65, %66 : vector<2x128xf32>
    %68 = math.tanh %67 : vector<2x128xf32>
    %69 = arith.mulf %64, %68 : vector<2x128xf32>
    %c2_26 = arith.constant 2 : index
    %c0_27 = arith.constant 0 : index
    %70 = vector.load %arg9[%c2_26, %c0_27] : memref<16x128xf32, #tpu.memory_space<vmem>>, vector<2x128xf32>
    tpu.vector_store %arg9[%c2_26, %c0_27], %69 {strides = array<i32>} : memref<16x128xf32, #tpu.memory_space<vmem>>, vector<2x128xf32>,
    %c4 = arith.constant 4 : index
    %c0_28 = arith.constant 0 : index
    %71 = vector.load %arg8[%c4, %c0_28] : memref<16x512xf32, #tpu.memory_space<vmem>>, vector<2x512xf32>
    %72 = arith.truncf %69 : vector<2x128xf32> to vector<2x128xbf16>
    %c0_29 = arith.constant 0 : index
    %c0_30 = arith.constant 0 : index
    %73 = vector.load %arg3[%c0_29, %c0_30] : memref<128x512xbf16, #tpu.memory_space<vmem>>, vector<128x512xbf16>
    %cst_31 = arith.constant dense<0.000000e+00> : vector<2x512xf32>
    %74 = tpu.matmul %72, %73, %cst_31 {dimension_numbers = #tpu.dot_dimension_numbers<[1], [0], [0], [1], [0, 0, 1, 1], [], []>} : vector<2x128xbf16>, vector<128x512xbf16>, vector<2x512xf32> -> vector<2x512xf32>
    %75 = arith.addf %71, %74 : vector<2x512xf32>
    %76 = vector.extract_strided_slice %75 {offsets = [0, 0], sizes = [2, 128], strides = [1, 1]} : vector<2x512xf32> to vector<2x128xf32>
    %77 = arith.negf %76 : vector<2x128xf32>
    %78 = math.exp %77 : vector<2x128xf32>
    %cst_32 = arith.constant 1.000000e+00 : f32
    %79 = vector.broadcast %cst_32 : f32 to vector<2x128xf32>
    %80 = arith.addf %79, %78 : vector<2x128xf32>
    %81 = arith.divf %79, %80 : vector<2x128xf32>
    %82 = vector.extract_strided_slice %75 {offsets = [0, 128], sizes = [2, 128], strides = [1, 1]} : vector<2x512xf32> to vector<2x128xf32>
    %83 = arith.negf %82 : vector<2x128xf32>
    %84 = math.exp %83 : vector<2x128xf32>
    %cst_33 = arith.constant 1.000000e+00 : f32
    %85 = vector.broadcast %cst_33 : f32 to vector<2x128xf32>
    %86 = arith.addf %85, %84 : vector<2x128xf32>
    %87 = arith.divf %85, %86 : vector<2x128xf32>
    %88 = vector.extract_strided_slice %75 {offsets = [0, 256], sizes = [2, 128], strides = [1, 1]} : vector<2x512xf32> to vector<2x128xf32>
    %89 = math.tanh %88 : vector<2x128xf32>
    %90 = vector.extract_strided_slice %75 {offsets = [0, 384], sizes = [2, 128], strides = [1, 1]} : vector<2x512xf32> to vector<2x128xf32>
    %91 = arith.negf %90 : vector<2x128xf32>
    %92 = math.exp %91 : vector<2x128xf32>
    %cst_34 = arith.constant 1.000000e+00 : f32
    %93 = vector.broadcast %cst_34 : f32 to vector<2x128xf32>
    %94 = arith.addf %93, %92 : vector<2x128xf32>
    %95 = arith.divf %93, %94 : vector<2x128xf32>
    %96 = arith.mulf %87, %67 : vector<2x128xf32>
    %97 = arith.mulf %81, %89 : vector<2x128xf32>
    %98 = arith.addf %96, %97 : vector<2x128xf32>
    %99 = math.tanh %98 : vector<2x128xf32>
    %100 = arith.mulf %95, %99 : vector<2x128xf32>
    %c4_35 = arith.constant 4 : index
    %c0_36 = arith.constant 0 : index
    %101 = vector.load %arg9[%c4_35, %c0_36] : memref<16x128xf32, #tpu.memory_space<vmem>>, vector<2x128xf32>
    tpu.vector_store %arg9[%c4_35, %c0_36], %100 {strides = array<i32>} : memref<16x128xf32, #tpu.memory_space<vmem>>, vector<2x128xf32>,
    %c6 = arith.constant 6 : index
    %c0_37 = arith.constant 0 : index
    %102 = vector.load %arg8[%c6, %c0_37] : memref<16x512xf32, #tpu.memory_space<vmem>>, vector<2x512xf32>
    %103 = arith.truncf %100 : vector<2x128xf32> to vector<2x128xbf16>
    %c0_38 = arith.constant 0 : index
    %c0_39 = arith.constant 0 : index
    %104 = vector.load %arg3[%c0_38, %c0_39] : memref<128x512xbf16, #tpu.memory_space<vmem>>, vector<128x512xbf16>
    %cst_40 = arith.constant dense<0.000000e+00> : vector<2x512xf32>
    %105 = tpu.matmul %103, %104, %cst_40 {dimension_numbers = #tpu.dot_dimension_numbers<[1], [0], [0], [1], [0, 0, 1, 1], [], []>} : vector<2x128xbf16>, vector<128x512xbf16>, vector<2x512xf32> -> vector<2x512xf32>
    %106 = arith.addf %102, %105 : vector<2x512xf32>
    %107 = vector.extract_strided_slice %106 {offsets = [0, 0], sizes = [2, 128], strides = [1, 1]} : vector<2x512xf32> to vector<2x128xf32>
    %108 = arith.negf %107 : vector<2x128xf32>
    %109 = math.exp %108 : vector<2x128xf32>
    %cst_41 = arith.constant 1.000000e+00 : f32
    %110 = vector.broadcast %cst_41 : f32 to vector<2x128xf32>
    %111 = arith.addf %110, %109 : vector<2x128xf32>
    %112 = arith.divf %110, %111 : vector<2x128xf32>
    %113 = vector.extract_strided_slice %106 {offsets = [0, 128], sizes = [2, 128], strides = [1, 1]} : vector<2x512xf32> to vector<2x128xf32>
    %114 = arith.negf %113 : vector<2x128xf32>
    %115 = math.exp %114 : vector<2x128xf32>
    %cst_42 = arith.constant 1.000000e+00 : f32
    %116 = vector.broadcast %cst_42 : f32 to vector<2x128xf32>
    %117 = arith.addf %116, %115 : vector<2x128xf32>
    %118 = arith.divf %116, %117 : vector<2x128xf32>
    %119 = vector.extract_strided_slice %106 {offsets = [0, 256], sizes = [2, 128], strides = [1, 1]} : vector<2x512xf32> to vector<2x128xf32>
    %120 = math.tanh %119 : vector<2x128xf32>
    %121 = vector.extract_strided_slice %106 {offsets = [0, 384], sizes = [2, 128], strides = [1, 1]} : vector<2x512xf32> to vector<2x128xf32>
    %122 = arith.negf %121 : vector<2x128xf32>
    %123 = math.exp %122 : vector<2x128xf32>
    %cst_43 = arith.constant 1.000000e+00 : f32
    %124 = vector.broadcast %cst_43 : f32 to vector<2x128xf32>
    %125 = arith.addf %124, %123 : vector<2x128xf32>
    %126 = arith.divf %124, %125 : vector<2x128xf32>
    %127 = arith.mulf %118, %98 : vector<2x128xf32>
    %128 = arith.mulf %112, %120 : vector<2x128xf32>
    %129 = arith.addf %127, %128 : vector<2x128xf32>
    %130 = math.tanh %129 : vector<2x128xf32>
    %131 = arith.mulf %126, %130 : vector<2x128xf32>
    %c6_44 = arith.constant 6 : index
    %c0_45 = arith.constant 0 : index
    %132 = vector.load %arg9[%c6_44, %c0_45] : memref<16x128xf32, #tpu.memory_space<vmem>>, vector<2x128xf32>
    tpu.vector_store %arg9[%c6_44, %c0_45], %131 {strides = array<i32>} : memref<16x128xf32, #tpu.memory_space<vmem>>, vector<2x128xf32>,
    %c8 = arith.constant 8 : index
    %c0_46 = arith.constant 0 : index
    %133 = vector.load %arg8[%c8, %c0_46] : memref<16x512xf32, #tpu.memory_space<vmem>>, vector<2x512xf32>
    %134 = arith.truncf %131 : vector<2x128xf32> to vector<2x128xbf16>
    %c0_47 = arith.constant 0 : index
    %c0_48 = arith.constant 0 : index
    %135 = vector.load %arg3[%c0_47, %c0_48] : memref<128x512xbf16, #tpu.memory_space<vmem>>, vector<128x512xbf16>
    %cst_49 = arith.constant dense<0.000000e+00> : vector<2x512xf32>
    %136 = tpu.matmul %134, %135, %cst_49 {dimension_numbers = #tpu.dot_dimension_numbers<[1], [0], [0], [1], [0, 0, 1, 1], [], []>} : vector<2x128xbf16>, vector<128x512xbf16>, vector<2x512xf32> -> vector<2x512xf32>
    %137 = arith.addf %133, %136 : vector<2x512xf32>
    %138 = vector.extract_strided_slice %137 {offsets = [0, 0], sizes = [2, 128], strides = [1, 1]} : vector<2x512xf32> to vector<2x128xf32>
    %139 = arith.negf %138 : vector<2x128xf32>
    %140 = math.exp %139 : vector<2x128xf32>
    %cst_50 = arith.constant 1.000000e+00 : f32
    %141 = vector.broadcast %cst_50 : f32 to vector<2x128xf32>
    %142 = arith.addf %141, %140 : vector<2x128xf32>
    %143 = arith.divf %141, %142 : vector<2x128xf32>
    %144 = vector.extract_strided_slice %137 {offsets = [0, 128], sizes = [2, 128], strides = [1, 1]} : vector<2x512xf32> to vector<2x128xf32>
    %145 = arith.negf %144 : vector<2x128xf32>
    %146 = math.exp %145 : vector<2x128xf32>
    %cst_51 = arith.constant 1.000000e+00 : f32
    %147 = vector.broadcast %cst_51 : f32 to vector<2x128xf32>
    %148 = arith.addf %147, %146 : vector<2x128xf32>
    %149 = arith.divf %147, %148 : vector<2x128xf32>
    %150 = vector.extract_strided_slice %137 {offsets = [0, 256], sizes = [2, 128], strides = [1, 1]} : vector<2x512xf32> to vector<2x128xf32>
    %151 = math.tanh %150 : vector<2x128xf32>
    %152 = vector.extract_strided_slice %137 {offsets = [0, 384], sizes = [2, 128], strides = [1, 1]} : vector<2x512xf32> to vector<2x128xf32>
    %153 = arith.negf %152 : vector<2x128xf32>
    %154 = math.exp %153 : vector<2x128xf32>
    %cst_52 = arith.constant 1.000000e+00 : f32
    %155 = vector.broadcast %cst_52 : f32 to vector<2x128xf32>
    %156 = arith.addf %155, %154 : vector<2x128xf32>
    %157 = arith.divf %155, %156 : vector<2x128xf32>
    %158 = arith.mulf %149, %129 : vector<2x128xf32>
    %159 = arith.mulf %143, %151 : vector<2x128xf32>
    %160 = arith.addf %158, %159 : vector<2x128xf32>
    %161 = math.tanh %160 : vector<2x128xf32>
    %162 = arith.mulf %157, %161 : vector<2x128xf32>
    %c8_53 = arith.constant 8 : index
    %c0_54 = arith.constant 0 : index
    %163 = vector.load %arg9[%c8_53, %c0_54] : memref<16x128xf32, #tpu.memory_space<vmem>>, vector<2x128xf32>
    tpu.vector_store %arg9[%c8_53, %c0_54], %162 {strides = array<i32>} : memref<16x128xf32, #tpu.memory_space<vmem>>, vector<2x128xf32>,
    %c10 = arith.constant 10 : index
    %c0_55 = arith.constant 0 : index
    %164 = vector.load %arg8[%c10, %c0_55] : memref<16x512xf32, #tpu.memory_space<vmem>>, vector<2x512xf32>
    %165 = arith.truncf %162 : vector<2x128xf32> to vector<2x128xbf16>
    %c0_56 = arith.constant 0 : index
    %c0_57 = arith.constant 0 : index
    %166 = vector.load %arg3[%c0_56, %c0_57] : memref<128x512xbf16, #tpu.memory_space<vmem>>, vector<128x512xbf16>
    %cst_58 = arith.constant dense<0.000000e+00> : vector<2x512xf32>
    %167 = tpu.matmul %165, %166, %cst_58 {dimension_numbers = #tpu.dot_dimension_numbers<[1], [0], [0], [1], [0, 0, 1, 1], [], []>} : vector<2x128xbf16>, vector<128x512xbf16>, vector<2x512xf32> -> vector<2x512xf32>
    %168 = arith.addf %164, %167 : vector<2x512xf32>
    %169 = vector.extract_strided_slice %168 {offsets = [0, 0], sizes = [2, 128], strides = [1, 1]} : vector<2x512xf32> to vector<2x128xf32>
    %170 = arith.negf %169 : vector<2x128xf32>
    %171 = math.exp %170 : vector<2x128xf32>
    %cst_59 = arith.constant 1.000000e+00 : f32
    %172 = vector.broadcast %cst_59 : f32 to vector<2x128xf32>
    %173 = arith.addf %172, %171 : vector<2x128xf32>
    %174 = arith.divf %172, %173 : vector<2x128xf32>
    %175 = vector.extract_strided_slice %168 {offsets = [0, 128], sizes = [2, 128], strides = [1, 1]} : vector<2x512xf32> to vector<2x128xf32>
    %176 = arith.negf %175 : vector<2x128xf32>
    %177 = math.exp %176 : vector<2x128xf32>
    %cst_60 = arith.constant 1.000000e+00 : f32
    %178 = vector.broadcast %cst_60 : f32 to vector<2x128xf32>
    %179 = arith.addf %178, %177 : vector<2x128xf32>
    %180 = arith.divf %178, %179 : vector<2x128xf32>
    %181 = vector.extract_strided_slice %168 {offsets = [0, 256], sizes = [2, 128], strides = [1, 1]} : vector<2x512xf32> to vector<2x128xf32>
    %182 = math.tanh %181 : vector<2x128xf32>
    %183 = vector.extract_strided_slice %168 {offsets = [0, 384], sizes = [2, 128], strides = [1, 1]} : vector<2x512xf32> to vector<2x128xf32>
    %184 = arith.negf %183 : vector<2x128xf32>
    %185 = math.exp %184 : vector<2x128xf32>
    %cst_61 = arith.constant 1.000000e+00 : f32
    %186 = vector.broadcast %cst_61 : f32 to vector<2x128xf32>
    %187 = arith.addf %186, %185 : vector<2x128xf32>
    %188 = arith.divf %186, %187 : vector<2x128xf32>
    %189 = arith.mulf %180, %160 : vector<2x128xf32>
    %190 = arith.mulf %174, %182 : vector<2x128xf32>
    %191 = arith.addf %189, %190 : vector<2x128xf32>
    %192 = math.tanh %191 : vector<2x128xf32>
    %193 = arith.mulf %188, %192 : vector<2x128xf32>
    %c10_62 = arith.constant 10 : index
    %c0_63 = arith.constant 0 : index
    %194 = vector.load %arg9[%c10_62, %c0_63] : memref<16x128xf32, #tpu.memory_space<vmem>>, vector<2x128xf32>
    tpu.vector_store %arg9[%c10_62, %c0_63], %193 {strides = array<i32>} : memref<16x128xf32, #tpu.memory_space<vmem>>, vector<2x128xf32>,
    %c12 = arith.constant 12 : index
    %c0_64 = arith.constant 0 : index
    %195 = vector.load %arg8[%c12, %c0_64] : memref<16x512xf32, #tpu.memory_space<vmem>>, vector<2x512xf32>
    %196 = arith.truncf %193 : vector<2x128xf32> to vector<2x128xbf16>
    %c0_65 = arith.constant 0 : index
    %c0_66 = arith.constant 0 : index
    %197 = vector.load %arg3[%c0_65, %c0_66] : memref<128x512xbf16, #tpu.memory_space<vmem>>, vector<128x512xbf16>
    %cst_67 = arith.constant dense<0.000000e+00> : vector<2x512xf32>
    %198 = tpu.matmul %196, %197, %cst_67 {dimension_numbers = #tpu.dot_dimension_numbers<[1], [0], [0], [1], [0, 0, 1, 1], [], []>} : vector<2x128xbf16>, vector<128x512xbf16>, vector<2x512xf32> -> vector<2x512xf32>
    %199 = arith.addf %195, %198 : vector<2x512xf32>
    %200 = vector.extract_strided_slice %199 {offsets = [0, 0], sizes = [2, 128], strides = [1, 1]} : vector<2x512xf32> to vector<2x128xf32>
    %201 = arith.negf %200 : vector<2x128xf32>
    %202 = math.exp %201 : vector<2x128xf32>
    %cst_68 = arith.constant 1.000000e+00 : f32
    %203 = vector.broadcast %cst_68 : f32 to vector<2x128xf32>
    %204 = arith.addf %203, %202 : vector<2x128xf32>
    %205 = arith.divf %203, %204 : vector<2x128xf32>
    %206 = vector.extract_strided_slice %199 {offsets = [0, 128], sizes = [2, 128], strides = [1, 1]} : vector<2x512xf32> to vector<2x128xf32>
    %207 = arith.negf %206 : vector<2x128xf32>
    %208 = math.exp %207 : vector<2x128xf32>
    %cst_69 = arith.constant 1.000000e+00 : f32
    %209 = vector.broadcast %cst_69 : f32 to vector<2x128xf32>
    %210 = arith.addf %209, %208 : vector<2x128xf32>
    %211 = arith.divf %209, %210 : vector<2x128xf32>
    %212 = vector.extract_strided_slice %199 {offsets = [0, 256], sizes = [2, 128], strides = [1, 1]} : vector<2x512xf32> to vector<2x128xf32>
    %213 = math.tanh %212 : vector<2x128xf32>
    %214 = vector.extract_strided_slice %199 {offsets = [0, 384], sizes = [2, 128], strides = [1, 1]} : vector<2x512xf32> to vector<2x128xf32>
    %215 = arith.negf %214 : vector<2x128xf32>
    %216 = math.exp %215 : vector<2x128xf32>
    %cst_70 = arith.constant 1.000000e+00 : f32
    %217 = vector.broadcast %cst_70 : f32 to vector<2x128xf32>
    %218 = arith.addf %217, %216 : vector<2x128xf32>
    %219 = arith.divf %217, %218 : vector<2x128xf32>
    %220 = arith.mulf %211, %191 : vector<2x128xf32>
    %221 = arith.mulf %205, %213 : vector<2x128xf32>
    %222 = arith.addf %220, %221 : vector<2x128xf32>
    %223 = math.tanh %222 : vector<2x128xf32>
    %224 = arith.mulf %219, %223 : vector<2x128xf32>
    %c12_71 = arith.constant 12 : index
    %c0_72 = arith.constant 0 : index
    %225 = vector.load %arg9[%c12_71, %c0_72] : memref<16x128xf32, #tpu.memory_space<vmem>>, vector<2x128xf32>
    tpu.vector_store %arg9[%c12_71, %c0_72], %224 {strides = array<i32>} : memref<16x128xf32, #tpu.memory_space<vmem>>, vector<2x128xf32>,
    %c14 = arith.constant 14 : index
    %c0_73 = arith.constant 0 : index
    %226 = vector.load %arg8[%c14, %c0_73] : memref<16x512xf32, #tpu.memory_space<vmem>>, vector<2x512xf32>
    %227 = arith.truncf %224 : vector<2x128xf32> to vector<2x128xbf16>
    %c0_74 = arith.constant 0 : index
    %c0_75 = arith.constant 0 : index
    %228 = vector.load %arg3[%c0_74, %c0_75] : memref<128x512xbf16, #tpu.memory_space<vmem>>, vector<128x512xbf16>
    %cst_76 = arith.constant dense<0.000000e+00> : vector<2x512xf32>
    %229 = tpu.matmul %227, %228, %cst_76 {dimension_numbers = #tpu.dot_dimension_numbers<[1], [0], [0], [1], [0, 0, 1, 1], [], []>} : vector<2x128xbf16>, vector<128x512xbf16>, vector<2x512xf32> -> vector<2x512xf32>
    %230 = arith.addf %226, %229 : vector<2x512xf32>
    %231 = vector.extract_strided_slice %230 {offsets = [0, 0], sizes = [2, 128], strides = [1, 1]} : vector<2x512xf32> to vector<2x128xf32>
    %232 = arith.negf %231 : vector<2x128xf32>
    %233 = math.exp %232 : vector<2x128xf32>
    %cst_77 = arith.constant 1.000000e+00 : f32
    %234 = vector.broadcast %cst_77 : f32 to vector<2x128xf32>
    %235 = arith.addf %234, %233 : vector<2x128xf32>
    %236 = arith.divf %234, %235 : vector<2x128xf32>
    %237 = vector.extract_strided_slice %230 {offsets = [0, 128], sizes = [2, 128], strides = [1, 1]} : vector<2x512xf32> to vector<2x128xf32>
    %238 = arith.negf %237 : vector<2x128xf32>
    %239 = math.exp %238 : vector<2x128xf32>
    %cst_78 = arith.constant 1.000000e+00 : f32
    %240 = vector.broadcast %cst_78 : f32 to vector<2x128xf32>
    %241 = arith.addf %240, %239 : vector<2x128xf32>
    %242 = arith.divf %240, %241 : vector<2x128xf32>
    %243 = vector.extract_strided_slice %230 {offsets = [0, 256], sizes = [2, 128], strides = [1, 1]} : vector<2x512xf32> to vector<2x128xf32>
    %244 = math.tanh %243 : vector<2x128xf32>
    %245 = vector.extract_strided_slice %230 {offsets = [0, 384], sizes = [2, 128], strides = [1, 1]} : vector<2x512xf32> to vector<2x128xf32>
    %246 = arith.negf %245 : vector<2x128xf32>
    %247 = math.exp %246 : vector<2x128xf32>
    %cst_79 = arith.constant 1.000000e+00 : f32
    %248 = vector.broadcast %cst_79 : f32 to vector<2x128xf32>
    %249 = arith.addf %248, %247 : vector<2x128xf32>
    %250 = arith.divf %248, %249 : vector<2x128xf32>
    %251 = arith.mulf %242, %222 : vector<2x128xf32>
    %252 = arith.mulf %236, %244 : vector<2x128xf32>
    %253 = arith.addf %251, %252 : vector<2x128xf32>
    %254 = math.tanh %253 : vector<2x128xf32>
    %255 = arith.mulf %250, %254 : vector<2x128xf32>
    %c14_80 = arith.constant 14 : index
    %c0_81 = arith.constant 0 : index
    %256 = vector.load %arg9[%c14_80, %c0_81] : memref<16x128xf32, #tpu.memory_space<vmem>>, vector<2x128xf32>
    tpu.vector_store %arg9[%c14_80, %c0_81], %255 {strides = array<i32>} : memref<16x128xf32, #tpu.memory_space<vmem>>, vector<2x128xf32>,
    %c0_82 = arith.constant 0 : index
    %c0_83 = arith.constant 0 : index
    %257 = vector.load %arg9[%c0_82, %c0_83] : memref<16x128xf32, #tpu.memory_space<vmem>>, vector<16x128xf32>
    %c0_84 = arith.constant 0 : index
    %c0_85 = arith.constant 0 : index
    %258 = vector.load %arg5[%c0_84, %c0_85] : memref<128x1xf32, #tpu.memory_space<vmem>>, vector<128x1xf32>
    %cst_86 = arith.constant dense<0.000000e+00> : vector<16x1xf32>
    %259 = tpu.matmul %257, %258, %cst_86 {dimension_numbers = #tpu.dot_dimension_numbers<[1], [0], [0], [1], [0, 0, 1, 1], [], []>} : vector<16x128xf32>, vector<128x1xf32>, vector<16x1xf32> -> vector<16x1xf32>
    %c0_87 = arith.constant 0 : index
    %c0_88 = arith.constant 0 : index
    %260 = vector.load %arg6[%c0_87, %c0_88] : memref<1x1xf32, #tpu.memory_space<vmem>>, vector<1x1xf32>
    %261 = vector.broadcast %260 : vector<1x1xf32> to vector<16x1xf32>
    %262 = arith.addf %259, %261 : vector<16x1xf32>
    %c0_89 = arith.constant 0 : index
    %c0_90 = arith.constant 0 : index
    %263 = vector.load %arg7[%c0_89, %c0_90] : memref<16x1xf32, #tpu.memory_space<vmem>>, vector<16x1xf32>
    tpu.vector_store %arg7[%c0_89, %c0_90], %262 {strides = array<i32>} : memref<16x1xf32, #tpu.memory_space<vmem>>, vector<16x1xf32>,
    return
  }
  func.func @transform_0(%arg0: i32) -> (i32, i32) {
    %c0_i32 = arith.constant 0 : i32
    %c0_i32_0 = arith.constant 0 : i32
    %c0_i32_1 = arith.constant 0 : i32
    return %c0_i32, %c0_i32_0 : i32, i32
  }
  func.func @transform_1(%arg0: i32) -> (i32, i32) {
    %c0_i32 = arith.constant 0 : i32
    %c0_i32_0 = arith.constant 0 : i32
    %c0_i32_1 = arith.constant 0 : i32
    return %c0_i32, %c0_i32_0 : i32, i32
  }
  func.func @transform_2(%arg0: i32) -> (i32, i32) {
    %c0_i32 = arith.constant 0 : i32
    %c0_i32_0 = arith.constant 0 : i32
    %c0_i32_1 = arith.constant 0 : i32
    return %c0_i32, %c0_i32_0 : i32, i32
  }
  func.func @transform_3(%arg0: i32) -> (i32, i32) {
    %c0_i32 = arith.constant 0 : i32
    %c0_i32_0 = arith.constant 0 : i32
    %c0_i32_1 = arith.constant 0 : i32
    return %c0_i32, %c0_i32_0 : i32, i32
  }
  func.func @transform_4(%arg0: i32) -> (i32, i32) {
    %c0_i32 = arith.constant 0 : i32
    %c0_i32_0 = arith.constant 0 : i32
    %c0_i32_1 = arith.constant 0 : i32
    return %c0_i32, %c0_i32_0 : i32, i32
  }
  func.func @transform_5(%arg0: i32) -> (i32, i32) {
    %c0_i32 = arith.constant 0 : i32
    %c0_i32_0 = arith.constant 0 : i32
    %c0_i32_1 = arith.constant 0 : i32
    return %c0_i32, %c0_i32_0 : i32, i32
  }
  func.func @transform_6(%arg0: i32) -> (i32, i32) {
    %c0_i32 = arith.constant 0 : i32
    %c0_i32_0 = arith.constant 0 : i32
    %c0_i32_1 = arith.constant 0 : i32
    return %c0_i32, %c0_i32_0 : i32, i32
  }
}

</mosaic_0001>

<llo_original>
// kernel: tpu_custom_call.1
$region0: #{tpu_custom_call.1}
  #allocation0 [shape = 'u32[]', space=smem, size = 0x4, offset = 0x4, fixed_abs, tag = 'smem constant byte address 0x4 - core index']
  #allocation1 [shape = 'u32[144,128]{1,0:T(1,128)}', space=vmem, size = 0x12000, scoped, tag = 'internal scratch']
  #allocation2 [shape = 'f32[16,512]{1,0:T(8,128)}', space=vmem, size = 0x8000, scoped, tag = 'scratch operand']
  #allocation3 [shape = 'f32[16,128]{1,0:T(8,128)}', space=vmem, size = 0x2000, scoped, tag = 'scratch operand']
  #allocation4 [shape = 'f32[1,1]{1,0:T(1,128)S(1)}', space=vmem, size = 0x200, scoped, tag = 'scoped memory for tpu_custom_call.1']
  %s0 = inlined_call_operand.vmem [shape: bf16[16,16], index: 0, kind: input, shape index: {}]
  %s1 = inlined_call_operand.vmem [shape: bf16[16,512], index: 1, kind: input, shape index: {}]
  %s2 = inlined_call_operand.hbm [shape: bf16[128,512], index: 2, kind: input, shape index: {}]
  %s3 = inlined_call_operand.vmem [shape: f32[1,512], index: 3, kind: input, shape index: {}]
  %s4 = inlined_call_operand.vmem [shape: f32[128,1], index: 4, kind: input, shape index: {}]
  %s5 = inlined_call_operand.<no memory space> [shape: f32[1,1], index: 5, kind: input, shape index: {}]
  %s6 = inlined_call_operand.vmem [shape: f32[16,1], index: 6, kind: output, shape index: {}]
  %s7 = sld [smem:[#allocation0]]
  $region38: #{tpu_custom_call.1} parent=0
    _
  %s9 = ssub.s32 1, %s7
  %s10 = scalar_select 0, %s9, %s7
  %v11 = vstv %s5
  %12 = vst [vmem:[#allocation4] sm:$0x1] %v11
  $region1: #{tpu_custom_call.1} parent=0
    #allocation5 [shape = 'u8[131072]{0}', space=vmem, size = 0x20000, scoped, tag = 'input window, operand 2, single buffered']
    #allocation6 [shape = 's32[1]{0}', space=sflag, size = 0x4, scoped, tag = 'scoped memory for tpu_custom_call.1']
    %13 = vsyncpa [#allocation6], 0
    // Predicated region
    $region2: #{tpu_custom_call.1} parent=1 // pred_check
      _
    $region3: #{tpu_custom_call.1} parent=1 // pred_check_branch
      %15 = sbr.rel (0) target = $region5
    $region4: #{tpu_custom_call.1} parent=1 // pred_region
      _
    $region5: #{tpu_custom_call.1} parent=1 // pred_fallthru
      _
    // Predicated region
    $region6: #{tpu_custom_call.1} parent=1 // pred_check
      _
    $region7: #{tpu_custom_call.1} parent=1 // pred_check_branch
      %17 = sbr.rel (0) target = $region9
    $region8: #{tpu_custom_call.1} parent=1 // pred_region
      _
    $region9: #{tpu_custom_call.1} parent=1 // pred_fallthru
      _
    // Predicated region
    $region10: #{tpu_custom_call.1} parent=1 // pred_check
      _
    $region11: #{tpu_custom_call.1} parent=1 // pred_check_branch
      %19 = sbr.rel (0) target = $region13
    $region12: #{tpu_custom_call.1} parent=1 // pred_region
      %s21 = ssub.s32 4096, 4096
      %22 = vsyncadd [#allocation6], %s21
      %s23 = sshll.u32 [#allocation5], 4
      %s24 = int_to_ptr.vmem [resolvable:$true] %s23
      %29 = dma.hbm_to_vmem [thread:$0]  %s2, 4096, %s24, [#allocation6], 256, 256, 16
    $region13: #{tpu_custom_call.1} parent=1 // pred_fallthru
      _
    // Predicated region
    $region14: #{tpu_custom_call.1} parent=1 // pred_check
      _
    $region15: #{tpu_custom_call.1} parent=1 // pred_check_branch
      %31 = sbr.rel (0) target = $region17
    $region16: #{tpu_custom_call.1} parent=1 // pred_region
      _
    $region17: #{tpu_custom_call.1} parent=1 // pred_fallthru
      _
    // Predicated region
    $region18: #{tpu_custom_call.1} parent=1 // pred_check
      _
    $region19: #{tpu_custom_call.1} parent=1 // pred_check_branch
      %33 = sbr.rel (0) target = $region21
    $region20: #{tpu_custom_call.1} parent=1 // pred_region
      _
    $region21: #{tpu_custom_call.1} parent=1 // pred_fallthru
      _
    // Predicated region
    $region22: #{tpu_custom_call.1} parent=1 // pred_check
      _
    $region23: #{tpu_custom_call.1} parent=1 // pred_check_branch
      %35 = sbr.rel (0) target = $region25
    $region24: #{tpu_custom_call.1} parent=1 // pred_region
      _
    $region25: #{tpu_custom_call.1} parent=1 // pred_fallthru
      _
    // Predicated region
    $region26: #{tpu_custom_call.1} parent=1 // pred_check
      _
    $region27: #{tpu_custom_call.1} parent=1 // pred_check_branch
      %37 = sbr.rel (0) target = $region29
    $region28: #{tpu_custom_call.1} parent=1 // pred_region
      %38 = dma.done [#allocation6], 4096
    $region29: #{tpu_custom_call.1} parent=1 // pred_fallthru
      _
    %v40 = vld [vmem:[%s0] sm:$0xf]
    %v41 = vld [vmem:[%s0 + $0x4] sm:$0xf]
    %v42 = vld [vmem:[%s1] sm:$0xff]
    %v43 = vld [vmem:[%s1 + $0x8] sm:$0xff]
    %v44 = vld [vmem:[%s1 + $0x10] sm:$0xff]
    %v45 = vld [vmem:[%s1 + $0x18] sm:$0xff]
    %v46 = vld [vmem:[%s3] sm:$0xf]
    %v48 = vlaneseq
    %v49 = vshrl.u32 %v48, 7
    %v50 = vsub.s32 0, %v49
    %v51 = vrot.slane %v46, %v50
    %v52 = vlaneseq
    %v53 = vshrl.u32 %v52, 7
    %v54 = vsub.s32 1, %v53
    %v55 = vrot.slane %v46, %v54
    %v56 = vlaneseq
    %v57 = vshrl.u32 %v56, 7
    %v58 = vsub.s32 2, %v57
    %v59 = vrot.slane %v46, %v58
    %v60 = vlaneseq
    %v61 = vshrl.u32 %v60, 7
    %v62 = vsub.s32 3, %v61
    %v63 = vrot.slane %v46, %v62
    %v70 = vunpack.c.l.b16 %v40
    %v71 = vunpack.c.l.b16 %v41
    %v72 = vpack.c.b16 %v71, %v70
    %v77 = vunpack.c.l.b16 %v42
    %v78 = vunpack.c.h.b16 %v42
    %v79 = vunpack.c.l.b16 %v43
    %v80 = vunpack.c.h.b16 %v43
    %v81 = vunpack.c.l.b16 %v44
    %v82 = vunpack.c.h.b16 %v44
    %v83 = vunpack.c.l.b16 %v45
    %v84 = vunpack.c.h.b16 %v45
    %v85 = vpack.c.b16 %v81, %v77
    %v86 = vpack.c.b16 %v82, %v78
    %v87 = vpack.c.b16 %v83, %v79
    %v88 = vpack.c.b16 %v84, %v80
    %vm93 = vcmask 130048
    %v95 = vsel %vm93, %v72, 0
    %97 = vmatprep.subr.bf16.mxu0 %v86
    %98 = vmatpush1.bf16.msra.mxu0 %v85
    %99 = vmatprep.subr.bf16.mxu0 0
    %100 = vmatpush1.bf16.msra.mxu0 0
    %101 = vmatprep.subr.bf16.mxu0 0
    %102 = vmatpush1.bf16.msra.mxu0 0
    %103 = vmatprep.subr.bf16.mxu0 0
    %104 = vmatpush1.bf16.msra.mxu0 0
    %105 = vmatprep.subr.bf16.mxu0 0
    %106 = vmatpush1.bf16.msra.mxu0 0
    %107 = vmatprep.subr.bf16.mxu0 0
    %108 = vmatpush1.bf16.msra.mxu0 0
    %109 = vmatprep.subr.bf16.mxu0 0
    %110 = vmatpush1.bf16.msra.mxu0 0
    %111 = vmatprep.subr.bf16.mxu0 0
    %112 = vmatpush1.bf16.msra.mxu0 0
    %113 = vmatprep.subr.bf16.mxu0 0
    %114 = vmatpush1.bf16.msra.mxu0 0
    %115 = vmatprep.subr.bf16.mxu0 0
    %116 = vmatpush1.bf16.msra.mxu0 0
    %117 = vmatprep.subr.bf16.mxu0 0
    %118 = vmatpush1.bf16.msra.mxu0 0
    %119 = vmatprep.subr.bf16.mxu0 0
    %120 = vmatpush1.bf16.msra.mxu0 0
    %121 = vmatprep.subr.bf16.mxu0 0
    %122 = vmatpush1.bf16.msra.mxu0 0
    %123 = vmatprep.subr.bf16.mxu0 0
    %124 = vmatpush1.bf16.msra.mxu0 0
    %125 = vmatprep.subr.bf16.mxu0 0
    %126 = vmatpush1.bf16.msra.mxu0 0
    %127 = vmatprep.subr.bf16.mxu0 0
    %128 = vmatpush1.bf16.msra.mxu0 0
    %129 = vmatprep.mubr.bf16.mxu0 0
    %130 = vmatmul.mubr.bf16.gmra.mrb[0].mxu0 %v95
    %v131 = vpop.f32.mrb[0].mxu0
    %v132 = vadd.f32 %v51, %v131
    %v133 = vpop.f32.mrb[0].mxu0
    %v134 = vadd.f32 %v55, %v133
    %v135 = vpop.f32.mrb[0].mxu0
    %v136 = vadd.f32 %v51, %v135
    %v137 = vpop.f32.mrb[0].mxu0
    %v138 = vadd.f32 %v55, %v137
    %139 = vdwg.mxu0
    %140 = vmatprep.subr.bf16.mxu0 %v88
    %141 = vmatpush1.bf16.msra.mxu0 %v87
    %142 = vmatprep.subr.bf16.mxu0 0
    %143 = vmatpush1.bf16.msra.mxu0 0
    %144 = vmatprep.subr.bf16.mxu0 0
    %145 = vmatpush1.bf16.msra.mxu0 0
    %146 = vmatprep.subr.bf16.mxu0 0
    %147 = vmatpush1.bf16.msra.mxu0 0
    %148 = vmatprep.subr.bf16.mxu0 0
    %149 = vmatpush1.bf16.msra.mxu0 0
    %150 = vmatprep.subr.bf16.mxu0 0
    %151 = vmatpush1.bf16.msra.mxu0 0
    %152 = vmatprep.subr.bf16.mxu0 0
    %153 = vmatpush1.bf16.msra.mxu0 0
    %154 = vmatprep.subr.bf16.mxu0 0
    %155 = vmatpush1.bf16.msra.mxu0 0
    %156 = vmatprep.subr.bf16.mxu0 0
    %157 = vmatpush1.bf16.msra.mxu0 0
    %158 = vmatprep.subr.bf16.mxu0 0
    %159 = vmatpush1.bf16.msra.mxu0 0
    %160 = vmatprep.subr.bf16.mxu0 0
    %161 = vmatpush1.bf16.msra.mxu0 0
    %162 = vmatprep.subr.bf16.mxu0 0
    %163 = vmatpush1.bf16.msra.mxu0 0
    %164 = vmatprep.subr.bf16.mxu0 0
    %165 = vmatpush1.bf16.msra.mxu0 0
    %166 = vmatprep.subr.bf16.mxu0 0
    %167 = vmatpush1.bf16.msra.mxu0 0
    %168 = vmatprep.subr.bf16.mxu0 0
    %169 = vmatpush1.bf16.msra.mxu0 0
    %170 = vmatprep.subr.bf16.mxu0 0
    %171 = vmatpush1.bf16.msra.mxu0 0
    %172 = vmatprep.mubr.bf16.mxu0 0
    %173 = vmatmul.mubr.bf16.gmra.mrb[0].mxu0 %v95
    %v174 = vpop.f32.mrb[0].mxu0
    %v175 = vadd.f32 %v59, %v174
    %v176 = vpop.f32.mrb[0].mxu0
    %v177 = vadd.f32 %v63, %v176
    %v178 = vpop.f32.mrb[0].mxu0
    %v179 = vadd.f32 %v59, %v178
    %v180 = vpop.f32.mrb[0].mxu0
    %v181 = vadd.f32 %v63, %v180
    %182 = vdwg.mxu0
    %183 = vst [vmem:[#allocation2] sm:$0xff] %v132
    %184 = vst [vmem:[#allocation2 + $0x8] sm:$0xff] %v134
    %185 = vst [vmem:[#allocation2 + $0x10] sm:$0xff] %v175
    %186 = vst [vmem:[#allocation2 + $0x18] sm:$0xff] %v177
    %187 = vst [vmem:[#allocation2 + $0x20] sm:$0xff] %v136
    %188 = vst [vmem:[#allocation2 + $0x28] sm:$0xff] %v138
    %189 = vst [vmem:[#allocation2 + $0x30] sm:$0xff] %v179
    %190 = vst [vmem:[#allocation2 + $0x38] sm:$0xff] %v181
    %v191 = vld [vmem:[#allocation2] sm:$0x3]
    %v192 = vld [vmem:[#allocation2 + $0x8] sm:$0x3]
    %v193 = vld [vmem:[#allocation2 + $0x10] sm:$0x3]
    %v194 = vld [vmem:[#allocation2 + $0x18] sm:$0x3]
    %v195 = vld [vmem:[#allocation5] sm:$0xff]
    %v196 = vld [vmem:[#allocation5 + $0x8] sm:$0xff]
    %v197 = vld [vmem:[#allocation5 + $0x10] sm:$0xff]
    %v198 = vld [vmem:[#allocation5 + $0x18] sm:$0xff]
    %v199 = vld [vmem:[#allocation5 + $0x20] sm:$0xff]
    %v200 = vld [vmem:[#allocation5 + $0x28] sm:$0xff]
    %v201 = vld [vmem:[#allocation5 + $0x30] sm:$0xff]
    %v202 = vld [vmem:[#allocation5 + $0x38] sm:$0xff]
    %v203 = vld [vmem:[#allocation5 + $0x40] sm:$0xff]
    %v204 = vld [vmem:[#allocation5 + $0x48] sm:$0xff]
    %v205 = vld [vmem:[#allocation5 + $0x50] sm:$0xff]
    %v206 = vld [vmem:[#allocation5 + $0x58] sm:$0xff]
    %v207 = vld [vmem:[#allocation5 + $0x60] sm:$0xff]
    %v208 = vld [vmem:[#allocation5 + $0x68] sm:$0xff]
    %v209 = vld [vmem:[#allocation5 + $0x70] sm:$0xff]
    %v210 = vld [vmem:[#allocation5 + $0x78] sm:$0xff]
    %v211 = vld [vmem:[#allocation5 + $0x80] sm:$0xff]
    %v212 = vld [vmem:[#allocation5 + $0x88] sm:$0xff]
    %v213 = vld [vmem:[#allocation5 + $0x90] sm:$0xff]
    %v214 = vld [vmem:[#allocation5 + $0x98] sm:$0xff]
    %v215 = vld [vmem:[#allocation5 + $0xa0] sm:$0xff]
    %v216 = vld [vmem:[#allocation5 + $0xa8] sm:$0xff]
    %v217 = vld [vmem:[#allocation5 + $0xb0] sm:$0xff]
    %v218 = vld [vmem:[#allocation5 + $0xb8] sm:$0xff]
    %v219 = vld [vmem:[#allocation5 + $0xc0] sm:$0xff]
    %v220 = vld [vmem:[#allocation5 + $0xc8] sm:$0xff]
    %v221 = vld [vmem:[#allocation5 + $0xd0] sm:$0xff]
    %v222 = vld [vmem:[#allocation5 + $0xd8] sm:$0xff]
    %v223 = vld [vmem:[#allocation5 + $0xe0] sm:$0xff]
    %v224 = vld [vmem:[#allocation5 + $0xe8] sm:$0xff]
    %v225 = vld [vmem:[#allocation5 + $0xf0] sm:$0xff]
    %v226 = vld [vmem:[#allocation5 + $0xf8] sm:$0xff]
    %v259 = vunpack.c.l.b16 %v195
    %v260 = vunpack.c.h.b16 %v195
    %v261 = vunpack.c.l.b16 %v196
    %v262 = vunpack.c.h.b16 %v196
    %v263 = vunpack.c.l.b16 %v197
    %v264 = vunpack.c.h.b16 %v197
    %v265 = vunpack.c.l.b16 %v198
    %v266 = vunpack.c.h.b16 %v198
    %v267 = vunpack.c.l.b16 %v199
    %v268 = vunpack.c.h.b16 %v199
    %v269 = vunpack.c.l.b16 %v200
    %v270 = vunpack.c.h.b16 %v200
    %v271 = vunpack.c.l.b16 %v201
    %v272 = vunpack.c.h.b16 %v201
    %v273 = vunpack.c.l.b16 %v202
    %v274 = vunpack.c.h.b16 %v202
    %v275 = vunpack.c.l.b16 %v203
    %v276 = vunpack.c.h.b16 %v203
    %v277 = vunpack.c.l.b16 %v204
    %v278 = vunpack.c.h.b16 %v204
    %v279 = vunpack.c.l.b16 %v205
    %v280 = vunpack.c.h.b16 %v205
    %v281 = vunpack.c.l.b16 %v206
    %v282 = vunpack.c.h.b16 %v206
    %v283 = vunpack.c.l.b16 %v207
    %v284 = vunpack.c.h.b16 %v207
    %v285 = vunpack.c.l.b16 %v208
    %v286 = vunpack.c.h.b16 %v208
    %v287 = vunpack.c.l.b16 %v209
    %v288 = vunpack.c.h.b16 %v209
    %v289 = vunpack.c.l.b16 %v210
    %v290 = vunpack.c.h.b16 %v210
    %v291 = vunpack.c.l.b16 %v211
    %v292 = vunpack.c.h.b16 %v211
    %v293 = vunpack.c.l.b16 %v212
    %v294 = vunpack.c.h.b16 %v212
    %v295 = vunpack.c.l.b16 %v213
    %v296 = vunpack.c.h.b16 %v213
    %v297 = vunpack.c.l.b16 %v214
    %v298 = vunpack.c.h.b16 %v214
    %v299 = vunpack.c.l.b16 %v215
    %v300 = vunpack.c.h.b16 %v215
    %v301 = vunpack.c.l.b16 %v216
    %v302 = vunpack.c.h.b16 %v216
    %v303 = vunpack.c.l.b16 %v217
    %v304 = vunpack.c.h.b16 %v217
    %v305 = vunpack.c.l.b16 %v218
    %v306 = vunpack.c.h.b16 %v218
    %v307 = vunpack.c.l.b16 %v219
    %v308 = vunpack.c.h.b16 %v219
    %v309 = vunpack.c.l.b16 %v220
    %v310 = vunpack.c.h.b16 %v220
    %v311 = vunpack.c.l.b16 %v221
    %v312 = vunpack.c.h.b16 %v221
    %v313 = vunpack.c.l.b16 %v222
    %v314 = vunpack.c.h.b16 %v222
    %v315 = vunpack.c.l.b16 %v223
    %v316 = vunpack.c.h.b16 %v223
    %v317 = vunpack.c.l.b16 %v224
    %v318 = vunpack.c.h.b16 %v224
    %v319 = vunpack.c.l.b16 %v225
    %v320 = vunpack.c.h.b16 %v225
    %v321 = vunpack.c.l.b16 %v226
    %v322 = vunpack.c.h.b16 %v226
    %v323 = vpack.c.b16 %v263, %v259
    %v324 = vpack.c.b16 %v264, %v260
    %v325 = vpack.c.b16 %v265, %v261
    %v326 = vpack.c.b16 %v266, %v262
    %v327 = vpack.c.b16 %v271, %v267
    %v328 = vpack.c.b16 %v272, %v268
    %v329 = vpack.c.b16 %v273, %v269
    %v330 = vpack.c.b16 %v274, %v270
    %v331 = vpack.c.b16 %v279, %v275
    %v332 = vpack.c.b16 %v280, %v276
    %v333 = vpack.c.b16 %v281, %v277
    %v334 = vpack.c.b16 %v282, %v278
    %v335 = vpack.c.b16 %v287, %v283
    %v336 = vpack.c.b16 %v288, %v284
    %v337 = vpack.c.b16 %v289, %v285
    %v338 = vpack.c.b16 %v290, %v286
    %v339 = vpack.c.b16 %v295, %v291
    %v340 = vpack.c.b16 %v296, %v292
    %v341 = vpack.c.b16 %v297, %v293
    %v342 = vpack.c.b16 %v298, %v294
    %v343 = vpack.c.b16 %v303, %v299
    %v344 = vpack.c.b16 %v304, %v300
    %v345 = vpack.c.b16 %v305, %v301
    %v346 = vpack.c.b16 %v306, %v302
    %v347 = vpack.c.b16 %v311, %v307
    %v348 = vpack.c.b16 %v312, %v308
    %v349 = vpack.c.b16 %v313, %v309
    %v350 = vpack.c.b16 %v314, %v310
    %v351 = vpack.c.b16 %v319, %v315
    %v352 = vpack.c.b16 %v320, %v316
    %v353 = vpack.c.b16 %v321, %v317
    %v354 = vpack.c.b16 %v322, %v318
    %387 = vmatprep.subr.bf16.mxu0 %v324
    %388 = vmatpush1.bf16.msra.mxu0 %v323
    %389 = vmatprep.subr.bf16.mxu0 %v328
    %390 = vmatpush1.bf16.msra.mxu0 %v327
    %391 = vmatprep.subr.bf16.mxu0 %v332
    %392 = vmatpush1.bf16.msra.mxu0 %v331
    %393 = vmatprep.subr.bf16.mxu0 %v336
    %394 = vmatpush1.bf16.msra.mxu0 %v335
    %395 = vmatprep.subr.bf16.mxu0 %v340
    %396 = vmatpush1.bf16.msra.mxu0 %v339
    %397 = vmatprep.subr.bf16.mxu0 %v344
    %398 = vmatpush1.bf16.msra.mxu0 %v343
    %399 = vmatprep.subr.bf16.mxu0 %v348
    %400 = vmatpush1.bf16.msra.mxu0 %v347
    %401 = vmatprep.subr.bf16.mxu0 %v352
    %402 = vmatpush1.bf16.msra.mxu0 %v351
    %403 = vmatprep.subr.bf16.mxu0 0
    %404 = vmatpush1.bf16.msra.mxu0 0
    %405 = vmatprep.subr.bf16.mxu0 0
    %406 = vmatpush1.bf16.msra.mxu0 0
    %407 = vmatprep.subr.bf16.mxu0 0
    %408 = vmatpush1.bf16.msra.mxu0 0
    %409 = vmatprep.subr.bf16.mxu0 0
    %410 = vmatpush1.bf16.msra.mxu0 0
    %411 = vmatprep.subr.bf16.mxu0 0
    %412 = vmatpush1.bf16.msra.mxu0 0
    %413 = vmatprep.subr.bf16.mxu0 0
    %414 = vmatpush1.bf16.msra.mxu0 0
    %415 = vmatprep.subr.bf16.mxu0 0
    %416 = vmatpush1.bf16.msra.mxu0 0
    %417 = vmatprep.subr.bf16.mxu0 0
    %418 = vmatpush1.bf16.msra.mxu0 0
    %419 = vmatprep.mubr.bf16.mxu0 0
    %420 = vmatmul.mubr.bf16.gmra.mrb[0].mxu0 0
    %v421 = vpop.f32.mrb[0].mxu0
    %v422 = vadd.f32 0.0, %v421
    %v423 = vpop.f32.mrb[0].mxu0
    %v424 = vadd.f32 0.0, %v423
    %v425 = vpop.f32.mrb[0].mxu0
    %v426 = vpop.f32.mrb[0].mxu0
    %427 = vdwg.mxu0
    %428 = vmatprep.subr.bf16.mxu0 %v326
    %429 = vmatpush1.bf16.msra.mxu0 %v325
    %430 = vmatprep.subr.bf16.mxu0 %v330
    %431 = vmatpush1.bf16.msra.mxu0 %v329
    %432 = vmatprep.subr.bf16.mxu0 %v334
    %433 = vmatpush1.bf16.msra.mxu0 %v333
    %434 = vmatprep.subr.bf16.mxu0 %v338
    %435 = vmatpush1.bf16.msra.mxu0 %v337
    %436 = vmatprep.subr.bf16.mxu0 %v342
    %437 = vmatpush1.bf16.msra.mxu0 %v341
    %438 = vmatprep.subr.bf16.mxu0 %v346
    %439 = vmatpush1.bf16.msra.mxu0 %v345
    %440 = vmatprep.subr.bf16.mxu0 %v350
    %441 = vmatpush1.bf16.msra.mxu0 %v349
    %442 = vmatprep.subr.bf16.mxu0 %v354
    %443 = vmatpush1.bf16.msra.mxu0 %v353
    %444 = vmatprep.subr.bf16.mxu0 0
    %445 = vmatpush1.bf16.msra.mxu0 0
    %446 = vmatprep.subr.bf16.mxu0 0
    %447 = vmatpush1.bf16.msra.mxu0 0
    %448 = vmatprep.subr.bf16.mxu0 0
    %449 = vmatpush1.bf16.msra.mxu0 0
    %450 = vmatprep.subr.bf16.mxu0 0
    %451 = vmatpush1.bf16.msra.mxu0 0
    %452 = vmatprep.subr.bf16.mxu0 0
    %453 = vmatpush1.bf16.msra.mxu0 0
    %454 = vmatprep.subr.bf16.mxu0 0
    %455 = vmatpush1.bf16.msra.mxu0 0
    %456 = vmatprep.subr.bf16.mxu0 0
    %457 = vmatpush1.bf16.msra.mxu0 0
    %458 = vmatprep.subr.bf16.mxu0 0
    %459 = vmatpush1.bf16.msra.mxu0 0
    %460 = vmatprep.mubr.bf16.mxu0 0
    %461 = vmatmul.mubr.bf16.gmra.mrb[0].mxu0 0
    %v462 = vpop.f32.mrb[0].mxu0
    %v463 = vadd.f32 0.0, %v462
    %v464 = vpop.f32.mrb[0].mxu0
    %v465 = vadd.f32 0.0, %v464
    %v466 = vpop.f32.mrb[0].mxu0
    %v467 = vpop.f32.mrb[0].mxu0
    %468 = vdwg.mxu0
    %v469 = vadd.f32 %v191, %v422
    %v470 = vadd.f32 %v192, %v424
    %v471 = vadd.f32 %v193, %v463
    %v472 = vadd.f32 %v194, %v465
    %v473 = vxor.u32 %v469, 2147483648
    %v474 = vmul.f32 %v473, 1.442695
    %v475 = vpow.pop %v474
    %v476 = vadd.f32 %v475, 1.0
    %v477 = vrcp.pop %v476
    %v478 = vmul.f32 1.0, %v477
    %v479 = vxor.u32 %v470, 2147483648
    %v480 = vmul.f32 %v479, 1.442695
    %v481 = vpow.pop %v480
    %v482 = vadd.f32 %v481, 1.0
    %v483 = vrcp.pop %v482
    %v484 = vmul.f32 1.0, %v483
    %v485 = vtanh.pop %v471
    %v486 = vxor.u32 %v472, 2147483648
    %v487 = vmul.f32 %v486, 1.442695
    %v488 = vpow.pop %v487
    %v489 = vadd.f32 %v488, 1.0
    %v490 = vrcp.pop %v489
    %v491 = vmul.f32 1.0, %v490
    %v492 = vmul.f32 %v484, 0.0
    %v493 = vmul.f32 %v478, %v485
    %v494 = vadd.f32 %v492, %v493
    %v495 = vtanh.pop %v494
    %v496 = vmul.f32 %v491, %v495
    %497 = vst [vmem:[#allocation3] sm:$0x3] %v496
    %v498 = vld [vmem:[#allocation2] sm:$0xc]
    %v499 = vld [vmem:[#allocation2 + $0x8] sm:$0xc]
    %v500 = vld [vmem:[#allocation2 + $0x10] sm:$0xc]
    %v501 = vld [vmem:[#allocation2 + $0x18] sm:$0xc]
    %v502 = vpack.c.bf16 %v496, %v496
    %v503 = vld [vmem:[#allocation5] sm:$0xff]
    %v504 = vld [vmem:[#allocation5 + $0x8] sm:$0xff]
    %v505 = vld [vmem:[#allocation5 + $0x10] sm:$0xff]
    %v506 = vld [vmem:[#allocation5 + $0x18] sm:$0xff]
    %v507 = vld [vmem:[#allocation5 + $0x20] sm:$0xff]
    %v508 = vld [vmem:[#allocation5 + $0x28] sm:$0xff]
    %v509 = vld [vmem:[#allocation5 + $0x30] sm:$0xff]
    %v510 = vld [vmem:[#allocation5 + $0x38] sm:$0xff]
    %v511 = vld [vmem:[#allocation5 + $0x40] sm:$0xff]
    %v512 = vld [vmem:[#allocation5 + $0x48] sm:$0xff]
    %v513 = vld [vmem:[#allocation5 + $0x50] sm:$0xff]
    %v514 = vld [vmem:[#allocation5 + $0x58] sm:$0xff]
    %v515 = vld [vmem:[#allocation5 + $0x60] sm:$0xff]
    %v516 = vld [vmem:[#allocation5 + $0x68] sm:$0xff]
    %v517 = vld [vmem:[#allocation5 + $0x70] sm:$0xff]
    %v518 = vld [vmem:[#allocation5 + $0x78] sm:$0xff]
    %v519 = vld [vmem:[#allocation5 + $0x80] sm:$0xff]
    %v520 = vld [vmem:[#allocation5 + $0x88] sm:$0xff]
    %v521 = vld [vmem:[#allocation5 + $0x90] sm:$0xff]
    %v522 = vld [vmem:[#allocation5 + $0x98] sm:$0xff]
    %v523 = vld [vmem:[#allocation5 + $0xa0] sm:$0xff]
    %v524 = vld [vmem:[#allocation5 + $0xa8] sm:$0xff]
    %v525 = vld [vmem:[#allocation5 + $0xb0] sm:$0xff]
    %v526 = vld [vmem:[#allocation5 + $0xb8] sm:$0xff]
    %v527 = vld [vmem:[#allocation5 + $0xc0] sm:$0xff]
    %v528 = vld [vmem:[#allocation5 + $0xc8] sm:$0xff]
    %v529 = vld [vmem:[#allocation5 + $0xd0] sm:$0xff]
    %v530 = vld [vmem:[#allocation5 + $0xd8] sm:$0xff]
    %v531 = vld [vmem:[#allocation5 + $0xe0] sm:$0xff]
    %v532 = vld [vmem:[#allocation5 + $0xe8] sm:$0xff]
    %v533 = vld [vmem:[#allocation5 + $0xf0] sm:$0xff]
    %v534 = vld [vmem:[#allocation5 + $0xf8] sm:$0xff]
    %v567 = vunpack.c.l.b16 %v503
    %v568 = vunpack.c.h.b16 %v503
    %v569 = vunpack.c.l.b16 %v504
    %v570 = vunpack.c.h.b16 %v504
    %v571 = vunpack.c.l.b16 %v505
    %v572 = vunpack.c.h.b16 %v505
    %v573 = vunpack.c.l.b16 %v506
    %v574 = vunpack.c.h.b16 %v506
    %v575 = vunpack.c.l.b16 %v507
    %v576 = vunpack.c.h.b16 %v507
    %v577 = vunpack.c.l.b16 %v508
    %v578 = vunpack.c.h.b16 %v508
    %v579 = vunpack.c.l.b16 %v509
    %v580 = vunpack.c.h.b16 %v509
    %v581 = vunpack.c.l.b16 %v510
    %v582 = vunpack.c.h.b16 %v510
    %v583 = vunpack.c.l.b16 %v511
    %v584 = vunpack.c.h.b16 %v511
    %v585 = vunpack.c.l.b16 %v512
    %v586 = vunpack.c.h.b16 %v512
    %v587 = vunpack.c.l.b16 %v513
    %v588 = vunpack.c.h.b16 %v513
    %v589 = vunpack.c.l.b16 %v514
    %v590 = vunpack.c.h.b16 %v514
    %v591 = vunpack.c.l.b16 %v515
    %v592 = vunpack.c.h.b16 %v515
    %v593 = vunpack.c.l.b16 %v516
    %v594 = vunpack.c.h.b16 %v516
    %v595 = vunpack.c.l.b16 %v517
    %v596 = vunpack.c.h.b16 %v517
    %v597 = vunpack.c.l.b16 %v518
    %v598 = vunpack.c.h.b16 %v518
    %v599 = vunpack.c.l.b16 %v519
    %v600 = vunpack.c.h.b16 %v519
    %v601 = vunpack.c.l.b16 %v520
    %v602 = vunpack.c.h.b16 %v520
    %v603 = vunpack.c.l.b16 %v521
    %v604 = vunpack.c.h.b16 %v521
    %v605 = vunpack.c.l.b16 %v522
    %v606 = vunpack.c.h.b16 %v522
    %v607 = vunpack.c.l.b16 %v523
    %v608 = vunpack.c.h.b16 %v523
    %v609 = vunpack.c.l.b16 %v524
    %v610 = vunpack.c.h.b16 %v524
    %v611 = vunpack.c.l.b16 %v525
    %v612 = vunpack.c.h.b16 %v525
    %v613 = vunpack.c.l.b16 %v526
    %v614 = vunpack.c.h.b16 %v526
    %v615 = vunpack.c.l.b16 %v527
    %v616 = vunpack.c.h.b16 %v527
    %v617 = vunpack.c.l.b16 %v528
    %v618 = vunpack.c.h.b16 %v528
    %v619 = vunpack.c.l.b16 %v529
    %v620 = vunpack.c.h.b16 %v529
    %v621 = vunpack.c.l.b16 %v530
    %v622 = vunpack.c.h.b16 %v530
    %v623 = vunpack.c.l.b16 %v531
    %v624 = vunpack.c.h.b16 %v531
    %v625 = vunpack.c.l.b16 %v532
    %v626 = vunpack.c.h.b16 %v532
    %v627 = vunpack.c.l.b16 %v533
    %v628 = vunpack.c.h.b16 %v533
    %v629 = vunpack.c.l.b16 %v534
    %v630 = vunpack.c.h.b16 %v534
    %v631 = vpack.c.b16 %v571, %v567
    %v632 = vpack.c.b16 %v572, %v568
    %v633 = vpack.c.b16 %v573, %v569
    %v634 = vpack.c.b16 %v574, %v570
    %v635 = vpack.c.b16 %v579, %v575
    %v636 = vpack.c.b16 %v580, %v576
    %v637 = vpack.c.b16 %v581, %v577
    %v638 = vpack.c.b16 %v582, %v578
    %v639 = vpack.c.b16 %v587, %v583
    %v640 = vpack.c.b16 %v588, %v584
    %v641 = vpack.c.b16 %v589, %v585
    %v642 = vpack.c.b16 %v590, %v586
    %v643 = vpack.c.b16 %v595, %v591
    %v644 = vpack.c.b16 %v596, %v592
    %v645 = vpack.c.b16 %v597, %v593
    %v646 = vpack.c.b16 %v598, %v594
    %v647 = vpack.c.b16 %v603, %v599
    %v648 = vpack.c.b16 %v604, %v600
    %v649 = vpack.c.b16 %v605, %v601
    %v650 = vpack.c.b16 %v606, %v602
    %v651 = vpack.c.b16 %v611, %v607
    %v652 = vpack.c.b16 %v612, %v608
    %v653 = vpack.c.b16 %v613, %v609
    %v654 = vpack.c.b16 %v614, %v610
    %v655 = vpack.c.b16 %v619, %v615
    %v656 = vpack.c.b16 %v620, %v616
    %v657 = vpack.c.b16 %v621, %v617
    %v658 = vpack.c.b16 %v622, %v618
    %v659 = vpack.c.b16 %v627, %v623
    %v660 = vpack.c.b16 %v628, %v624
    %v661 = vpack.c.b16 %v629, %v625
    %v662 = vpack.c.b16 %v630, %v626
    %695 = vmatprep.subr.bf16.mxu0 %v632
    %696 = vmatpush1.bf16.msra.mxu0 %v631
    %697 = vmatprep.subr.bf16.mxu0 %v636
    %698 = vmatpush1.bf16.msra.mxu0 %v635
    %699 = vmatprep.subr.bf16.mxu0 %v640
    %700 = vmatpush1.bf16.msra.mxu0 %v639
    %701 = vmatprep.subr.bf16.mxu0 %v644
    %702 = vmatpush1.bf16.msra.mxu0 %v643
    %703 = vmatprep.subr.bf16.mxu0 %v648
    %704 = vmatpush1.bf16.msra.mxu0 %v647
    %705 = vmatprep.subr.bf16.mxu0 %v652
    %706 = vmatpush1.bf16.msra.mxu0 %v651
    %707 = vmatprep.subr.bf16.mxu0 %v656
    %708 = vmatpush1.bf16.msra.mxu0 %v655
    %709 = vmatprep.subr.bf16.mxu0 %v660
    %710 = vmatpush1.bf16.msra.mxu0 %v659
    %711 = vmatprep.subr.bf16.mxu0 0
    %712 = vmatpush1.bf16.msra.mxu0 0
    %713 = vmatprep.subr.bf16.mxu0 0
    %714 = vmatpush1.bf16.msra.mxu0 0
    %715 = vmatprep.subr.bf16.mxu0 0
    %716 = vmatpush1.bf16.msra.mxu0 0
    %717 = vmatprep.subr.bf16.mxu0 0
    %718 = vmatpush1.bf16.msra.mxu0 0
    %719 = vmatprep.subr.bf16.mxu0 0
    %720 = vmatpush1.bf16.msra.mxu0 0
    %721 = vmatprep.subr.bf16.mxu0 0
    %722 = vmatpush1.bf16.msra.mxu0 0
    %723 = vmatprep.subr.bf16.mxu0 0
    %724 = vmatpush1.bf16.msra.mxu0 0
    %725 = vmatprep.subr.bf16.mxu0 0
    %726 = vmatpush1.bf16.msra.mxu0 0
    %727 = vmatprep.mubr.bf16.mxu0 0
    %728 = vmatmul.mubr.bf16.gmra.mrb[0].mxu0 %v502
    %v729 = vpop.f32.mrb[0].mxu0
    %v730 = vadd.f32 0.0, %v729
    %v731 = vpop.f32.mrb[0].mxu0
    %v732 = vadd.f32 0.0, %v731
    %v733 = vpop.f32.mrb[0].mxu0
    %v734 = vpop.f32.mrb[0].mxu0
    %735 = vdwg.mxu0
    %736 = vmatprep.subr.bf16.mxu0 %v634
    %737 = vmatpush1.bf16.msra.mxu0 %v633
    %738 = vmatprep.subr.bf16.mxu0 %v638
    %739 = vmatpush1.bf16.msra.mxu0 %v637
    %740 = vmatprep.subr.bf16.mxu0 %v642
    %741 = vmatpush1.bf16.msra.mxu0 %v641
    %742 = vmatprep.subr.bf16.mxu0 %v646
    %743 = vmatpush1.bf16.msra.mxu0 %v645
    %744 = vmatprep.subr.bf16.mxu0 %v650
    %745 = vmatpush1.bf16.msra.mxu0 %v649
    %746 = vmatprep.subr.bf16.mxu0 %v654
    %747 = vmatpush1.bf16.msra.mxu0 %v653
    %748 = vmatprep.subr.bf16.mxu0 %v658
    %749 = vmatpush1.bf16.msra.mxu0 %v657
    %750 = vmatprep.subr.bf16.mxu0 %v662
    %751 = vmatpush1.bf16.msra.mxu0 %v661
    %752 = vmatprep.subr.bf16.mxu0 0
    %753 = vmatpush1.bf16.msra.mxu0 0
    %754 = vmatprep.subr.bf16.mxu0 0
    %755 = vmatpush1.bf16.msra.mxu0 0
    %756 = vmatprep.subr.bf16.mxu0 0
    %757 = vmatpush1.bf16.msra.mxu0 0
    %758 = vmatprep.subr.bf16.mxu0 0
    %759 = vmatpush1.bf16.msra.mxu0 0
    %760 = vmatprep.subr.bf16.mxu0 0
    %761 = vmatpush1.bf16.msra.mxu0 0
    %762 = vmatprep.subr.bf16.mxu0 0
    %763 = vmatpush1.bf16.msra.mxu0 0
    %764 = vmatprep.subr.bf16.mxu0 0
    %765 = vmatpush1.bf16.msra.mxu0 0
    %766 = vmatprep.subr.bf16.mxu0 0
    %767 = vmatpush1.bf16.msra.mxu0 0
    %768 = vmatprep.mubr.bf16.mxu0 0
    %769 = vmatmul.mubr.bf16.gmra.mrb[0].mxu0 %v502
    %v770 = vpop.f32.mrb[0].mxu0
    %v771 = vadd.f32 0.0, %v770
    %v772 = vpop.f32.mrb[0].mxu0
    %v773 = vadd.f32 0.0, %v772
    %v774 = vpop.f32.mrb[0].mxu0
    %v775 = vpop.f32.mrb[0].mxu0
    %776 = vdwg.mxu0
    %v781 = vrot.slane %v730, 6
    %v782 = vrot.slane %v732, 6
    %v783 = vrot.slane %v771, 6
    %v784 = vrot.slane %v773, 6
    %v789 = vadd.f32 %v498, %v781
    %v790 = vadd.f32 %v499, %v782
    %v791 = vadd.f32 %v500, %v783
    %v792 = vadd.f32 %v501, %v784
    %v793 = vxor.u32 %v789, 2147483648
    %v794 = vmul.f32 %v793, 1.442695
    %v795 = vpow.pop %v794
    %v796 = vadd.f32 %v795, 1.0
    %v797 = vrcp.pop %v796
    %v798 = vmul.f32 1.0, %v797
    %v799 = vxor.u32 %v790, 2147483648
    %v800 = vmul.f32 %v799, 1.442695
    %v801 = vpow.pop %v800
    %v802 = vadd.f32 %v801, 1.0
    %v803 = vrcp.pop %v802
    %v804 = vmul.f32 1.0, %v803
    %v805 = vtanh.pop %v791
    %v806 = vxor.u32 %v792, 2147483648
    %v807 = vmul.f32 %v806, 1.442695
    %v808 = vpow.pop %v807
    %v809 = vadd.f32 %v808, 1.0
    %v810 = vrcp.pop %v809
    %v811 = vmul.f32 1.0, %v810
    %v813 = vrot.slane %v494, 6
    %v815 = vmul.f32 %v804, %v813
    %v816 = vmul.f32 %v798, %v805
    %v817 = vadd.f32 %v815, %v816
    %v818 = vtanh.pop %v817
    %v819 = vmul.f32 %v811, %v818
    %820 = vst [vmem:[#allocation3] sm:$0xc] %v819
    %v821 = vld [vmem:[#allocation2] sm:$0x30]
    %v822 = vld [vmem:[#allocation2 + $0x8] sm:$0x30]
    %v823 = vld [vmem:[#allocation2 + $0x10] sm:$0x30]
    %v824 = vld [vmem:[#allocation2 + $0x18] sm:$0x30]
    %v825 = vpack.c.bf16 %v819, %v819
    %v826 = vld [vmem:[#allocation5] sm:$0xff]
    %v827 = vld [vmem:[#allocation5 + $0x8] sm:$0xff]
    %v828 = vld [vmem:[#allocation5 + $0x10] sm:$0xff]
    %v829 = vld [vmem:[#allocation5 + $0x18] sm:$0xff]
    %v830 = vld [vmem:[#allocation5 + $0x20] sm:$0xff]
    %v831 = vld [vmem:[#allocation5 + $0x28] sm:$0xff]
    %v832 = vld [vmem:[#allocation5 + $0x30] sm:$0xff]
    %v833 = vld [vmem:[#allocation5 + $0x38] sm:$0xff]
    %v834 = vld [vmem:[#allocation5 + $0x40] sm:$0xff]
    %v835 = vld [vmem:[#allocation5 + $0x48] sm:$0xff]
    %v836 = vld [vmem:[#allocation5 + $0x50] sm:$0xff]
    %v837 = vld [vmem:[#allocation5 + $0x58] sm:$0xff]
    %v838 = vld [vmem:[#allocation5 + $0x60] sm:$0xff]
    %v839 = vld [vmem:[#allocation5 + $0x68] sm:$0xff]
    %v840 = vld [vmem:[#allocation5 + $0x70] sm:$0xff]
    %v841 = vld [vmem:[#allocation5 + $0x78] sm:$0xff]
    %v842 = vld [vmem:[#allocation5 + $0x80] sm:$0xff]
    %v843 = vld [vmem:[#allocation5 + $0x88] sm:$0xff]
    %v844 = vld [vmem:[#allocation5 + $0x90] sm:$0xff]
    %v845 = vld [vmem:[#allocation5 + $0x98] sm:$0xff]
    %v846 = vld [vmem:[#allocation5 + $0xa0] sm:$0xff]
    %v847 = vld [vmem:[#allocation5 + $0xa8] sm:$0xff]
    %v848 = vld [vmem:[#allocation5 + $0xb0] sm:$0xff]
    %v849 = vld [vmem:[#allocation5 + $0xb8] sm:$0xff]
    %v850 = vld [vmem:[#allocation5 + $0xc0] sm:$0xff]
    %v851 = vld [vmem:[#allocation5 + $0xc8] sm:$0xff]
    %v852 = vld [vmem:[#allocation5 + $0xd0] sm:$0xff]
    %v853 = vld [vmem:[#allocation5 + $0xd8] sm:$0xff]
    %v854 = vld [vmem:[#allocation5 + $0xe0] sm:$0xff]
    %v855 = vld [vmem:[#allocation5 + $0xe8] sm:$0xff]
    %v856 = vld [vmem:[#allocation5 + $0xf0] sm:$0xff]
    %v857 = vld [vmem:[#allocation5 + $0xf8] sm:$0xff]
    %v859 = vrot.slane %v825, 1
    %v893 = vunpack.c.l.b16 %v826
    %v894 = vunpack.c.h.b16 %v826
    %v895 = vunpack.c.l.b16 %v827
    %v896 = vunpack.c.h.b16 %v827
    %v897 = vunpack.c.l.b16 %v828
    %v898 = vunpack.c.h.b16 %v828
    %v899 = vunpack.c.l.b16 %v829
    %v900 = vunpack.c.h.b16 %v829
    %v901 = vunpack.c.l.b16 %v830
    %v902 = vunpack.c.h.b16 %v830
    %v903 = vunpack.c.l.b16 %v831
    %v904 = vunpack.c.h.b16 %v831
    %v905 = vunpack.c.l.b16 %v832
    %v906 = vunpack.c.h.b16 %v832
    %v907 = vunpack.c.l.b16 %v833
    %v908 = vunpack.c.h.b16 %v833
    %v909 = vunpack.c.l.b16 %v834
    %v910 = vunpack.c.h.b16 %v834
    %v911 = vunpack.c.l.b16 %v835
    %v912 = vunpack.c.h.b16 %v835
    %v913 = vunpack.c.l.b16 %v836
    %v914 = vunpack.c.h.b16 %v836
    %v915 = vunpack.c.l.b16 %v837
    %v916 = vunpack.c.h.b16 %v837
    %v917 = vunpack.c.l.b16 %v838
    %v918 = vunpack.c.h.b16 %v838
    %v919 = vunpack.c.l.b16 %v839
    %v920 = vunpack.c.h.b16 %v839
    %v921 = vunpack.c.l.b16 %v840
    %v922 = vunpack.c.h.b16 %v840
    %v923 = vunpack.c.l.b16 %v841
    %v924 = vunpack.c.h.b16 %v841
    %v925 = vunpack.c.l.b16 %v842
    %v926 = vunpack.c.h.b16 %v842
    %v927 = vunpack.c.l.b16 %v843
    %v928 = vunpack.c.h.b16 %v843
    %v929 = vunpack.c.l.b16 %v844
    %v930 = vunpack.c.h.b16 %v844
    %v931 = vunpack.c.l.b16 %v845
    %v932 = vunpack.c.h.b16 %v845
    %v933 = vunpack.c.l.b16 %v846
    %v934 = vunpack.c.h.b16 %v846
    %v935 = vunpack.c.l.b16 %v847
    %v936 = vunpack.c.h.b16 %v847
    %v937 = vunpack.c.l.b16 %v848
    %v938 = vunpack.c.h.b16 %v848
    %v939 = vunpack.c.l.b16 %v849
    %v940 = vunpack.c.h.b16 %v849
    %v941 = vunpack.c.l.b16 %v850
    %v942 = vunpack.c.h.b16 %v850
    %v943 = vunpack.c.l.b16 %v851
    %v944 = vunpack.c.h.b16 %v851
    %v945 = vunpack.c.l.b16 %v852
    %v946 = vunpack.c.h.b16 %v852
    %v947 = vunpack.c.l.b16 %v853
    %v948 = vunpack.c.h.b16 %v853
    %v949 = vunpack.c.l.b16 %v854
    %v950 = vunpack.c.h.b16 %v854
    %v951 = vunpack.c.l.b16 %v855
    %v952 = vunpack.c.h.b16 %v855
    %v953 = vunpack.c.l.b16 %v856
    %v954 = vunpack.c.h.b16 %v856
    %v955 = vunpack.c.l.b16 %v857
    %v956 = vunpack.c.h.b16 %v857
    %v957 = vpack.c.b16 %v897, %v893
    %v958 = vpack.c.b16 %v898, %v894
    %v959 = vpack.c.b16 %v899, %v895
    %v960 = vpack.c.b16 %v900, %v896
    %v961 = vpack.c.b16 %v905, %v901
    %v962 = vpack.c.b16 %v906, %v902
    %v963 = vpack.c.b16 %v907, %v903
    %v964 = vpack.c.b16 %v908, %v904
    %v965 = vpack.c.b16 %v913, %v909
    %v966 = vpack.c.b16 %v914, %v910
    %v967 = vpack.c.b16 %v915, %v911
    %v968 = vpack.c.b16 %v916, %v912
    %v969 = vpack.c.b16 %v921, %v917
    %v970 = vpack.c.b16 %v922, %v918
    %v971 = vpack.c.b16 %v923, %v919
    %v972 = vpack.c.b16 %v924, %v920
    %v973 = vpack.c.b16 %v929, %v925
    %v974 = vpack.c.b16 %v930, %v926
    %v975 = vpack.c.b16 %v931, %v927
    %v976 = vpack.c.b16 %v932, %v928
    %v977 = vpack.c.b16 %v937, %v933
    %v978 = vpack.c.b16 %v938, %v934
    %v979 = vpack.c.b16 %v939, %v935
    %v980 = vpack.c.b16 %v940, %v936
    %v981 = vpack.c.b16 %v945, %v941
    %v982 = vpack.c.b16 %v946, %v942
    %v983 = vpack.c.b16 %v947, %v943
    %v984 = vpack.c.b16 %v948, %v944
    %v985 = vpack.c.b16 %v953, %v949
    %v986 = vpack.c.b16 %v954, %v950
    %v987 = vpack.c.b16 %v955, %v951
    %v988 = vpack.c.b16 %v956, %v952
    %1021 = vmatprep.subr.bf16.mxu0 %v958
    %1022 = vmatpush1.bf16.msra.mxu0 %v957
    %1023 = vmatprep.subr.bf16.mxu0 %v962
    %1024 = vmatpush1.bf16.msra.mxu0 %v961
    %1025 = vmatprep.subr.bf16.mxu0 %v966
    %1026 = vmatpush1.bf16.msra.mxu0 %v965
    %1027 = vmatprep.subr.bf16.mxu0 %v970
    %1028 = vmatpush1.bf16.msra.mxu0 %v969
    %1029 = vmatprep.subr.bf16.mxu0 %v974
    %1030 = vmatpush1.bf16.msra.mxu0 %v973
    %1031 = vmatprep.subr.bf16.mxu0 %v978
    %1032 = vmatpush1.bf16.msra.mxu0 %v977
    %1033 = vmatprep.subr.bf16.mxu0 %v982
    %1034 = vmatpush1.bf16.msra.mxu0 %v981
    %1035 = vmatprep.subr.bf16.mxu0 %v986
    %1036 = vmatpush1.bf16.msra.mxu0 %v985
    %1037 = vmatprep.subr.bf16.mxu0 0
    %1038 = vmatpush1.bf16.msra.mxu0 0
    %1039 = vmatprep.subr.bf16.mxu0 0
    %1040 = vmatpush1.bf16.msra.mxu0 0
    %1041 = vmatprep.subr.bf16.mxu0 0
    %1042 = vmatpush1.bf16.msra.mxu0 0
    %1043 = vmatprep.subr.bf16.mxu0 0
    %1044 = vmatpush1.bf16.msra.mxu0 0
    %1045 = vmatprep.subr.bf16.mxu0 0
    %1046 = vmatpush1.bf16.msra.mxu0 0
    %1047 = vmatprep.subr.bf16.mxu0 0
    %1048 = vmatpush1.bf16.msra.mxu0 0
    %1049 = vmatprep.subr.bf16.mxu0 0
    %1050 = vmatpush1.bf16.msra.mxu0 0
    %1051 = vmatprep.subr.bf16.mxu0 0
    %1052 = vmatpush1.bf16.msra.mxu0 0
    %1053 = vmatprep.mubr.bf16.mxu0 0
    %1054 = vmatmul.mubr.bf16.gmra.mrb[0].mxu0 %v859
    %v1055 = vpop.f32.mrb[0].mxu0
    %v1056 = vadd.f32 0.0, %v1055
    %v1057 = vpop.f32.mrb[0].mxu0
    %v1058 = vadd.f32 0.0, %v1057
    %v1059 = vpop.f32.mrb[0].mxu0
    %v1060 = vpop.f32.mrb[0].mxu0
    %1061 = vdwg.mxu0
    %1062 = vmatprep.subr.bf16.mxu0 %v960
    %1063 = vmatpush1.bf16.msra.mxu0 %v959
    %1064 = vmatprep.subr.bf16.mxu0 %v964
    %1065 = vmatpush1.bf16.msra.mxu0 %v963
    %1066 = vmatprep.subr.bf16.mxu0 %v968
    %1067 = vmatpush1.bf16.msra.mxu0 %v967
    %1068 = vmatprep.subr.bf16.mxu0 %v972
    %1069 = vmatpush1.bf16.msra.mxu0 %v971
    %1070 = vmatprep.subr.bf16.mxu0 %v976
    %1071 = vmatpush1.bf16.msra.mxu0 %v975
    %1072 = vmatprep.subr.bf16.mxu0 %v980
    %1073 = vmatpush1.bf16.msra.mxu0 %v979
    %1074 = vmatprep.subr.bf16.mxu0 %v984
    %1075 = vmatpush1.bf16.msra.mxu0 %v983
    %1076 = vmatprep.subr.bf16.mxu0 %v988
    %1077 = vmatpush1.bf16.msra.mxu0 %v987
    %1078 = vmatprep.subr.bf16.mxu0 0
    %1079 = vmatpush1.bf16.msra.mxu0 0
    %1080 = vmatprep.subr.bf16.mxu0 0
    %1081 = vmatpush1.bf16.msra.mxu0 0
    %1082 = vmatprep.subr.bf16.mxu0 0
    %1083 = vmatpush1.bf16.msra.mxu0 0
    %1084 = vmatprep.subr.bf16.mxu0 0
    %1085 = vmatpush1.bf16.msra.mxu0 0
    %1086 = vmatprep.subr.bf16.mxu0 0
    %1087 = vmatpush1.bf16.msra.mxu0 0
    %1088 = vmatprep.subr.bf16.mxu0 0
    %1089 = vmatpush1.bf16.msra.mxu0 0
    %1090 = vmatprep.subr.bf16.mxu0 0
    %1091 = vmatpush1.bf16.msra.mxu0 0
    %1092 = vmatprep.subr.bf16.mxu0 0
    %1093 = vmatpush1.bf16.msra.mxu0 0
    %1094 = vmatprep.mubr.bf16.mxu0 0
    %1095 = vmatmul.mubr.bf16.gmra.mrb[0].mxu0 %v859
    %v1096 = vpop.f32.mrb[0].mxu0
    %v1097 = vadd.f32 0.0, %v1096
    %v1098 = vpop.f32.mrb[0].mxu0
    %v1099 = vadd.f32 0.0, %v1098
    %v1100 = vpop.f32.mrb[0].mxu0
    %v1101 = vpop.f32.mrb[0].mxu0
    %1102 = vdwg.mxu0
    %v1107 = vrot.slane %v1056, 4
    %v1108 = vrot.slane %v1058, 4
    %v1109 = vrot.slane %v1097, 4
    %v1110 = vrot.slane %v1099, 4
    %v1115 = vadd.f32 %v821, %v1107
    %v1116 = vadd.f32 %v822, %v1108
    %v1117 = vadd.f32 %v823, %v1109
    %v1118 = vadd.f32 %v824, %v1110
    %v1119 = vxor.u32 %v1115, 2147483648
    %v1120 = vmul.f32 %v1119, 1.442695
    %v1121 = vpow.pop %v1120
    %v1122 = vadd.f32 %v1121, 1.0
    %v1123 = vrcp.pop %v1122
    %v1124 = vmul.f32 1.0, %v1123
    %v1125 = vxor.u32 %v1116, 2147483648
    %v1126 = vmul.f32 %v1125, 1.442695
    %v1127 = vpow.pop %v1126
    %v1128 = vadd.f32 %v1127, 1.0
    %v1129 = vrcp.pop %v1128
    %v1130 = vmul.f32 1.0, %v1129
    %v1131 = vtanh.pop %v1117
    %v1132 = vxor.u32 %v1118, 2147483648
    %v1133 = vmul.f32 %v1132, 1.442695
    %v1134 = vpow.pop %v1133
    %v1135 = vadd.f32 %v1134, 1.0
    %v1136 = vrcp.pop %v1135
    %v1137 = vmul.f32 1.0, %v1136
    %v1139 = vrot.slane %v817, 6
    %v1141 = vmul.f32 %v1130, %v1139
    %v1142 = vmul.f32 %v1124, %v1131
    %v1143 = vadd.f32 %v1141, %v1142
    %v1144 = vtanh.pop %v1143
    %v1145 = vmul.f32 %v1137, %v1144
    %1146 = vst [vmem:[#allocation3] sm:$0x30] %v1145
    %v1147 = vld [vmem:[#allocation2] sm:$0xc0]
    %v1148 = vld [vmem:[#allocation2 + $0x8] sm:$0xc0]
    %v1149 = vld [vmem:[#allocation2 + $0x10] sm:$0xc0]
    %v1150 = vld [vmem:[#allocation2 + $0x18] sm:$0xc0]
    %v1151 = vpack.c.bf16 %v1145, %v1145
    %v1152 = vld [vmem:[#allocation5] sm:$0xff]
    %v1153 = vld [vmem:[#allocation5 + $0x8] sm:$0xff]
    %v1154 = vld [vmem:[#allocation5 + $0x10] sm:$0xff]
    %v1155 = vld [vmem:[#allocation5 + $0x18] sm:$0xff]
    %v1156 = vld [vmem:[#allocation5 + $0x20] sm:$0xff]
    %v1157 = vld [vmem:[#allocation5 + $0x28] sm:$0xff]
    %v1158 = vld [vmem:[#allocation5 + $0x30] sm:$0xff]
    %v1159 = vld [vmem:[#allocation5 + $0x38] sm:$0xff]
    %v1160 = vld [vmem:[#allocation5 + $0x40] sm:$0xff]
    %v1161 = vld [vmem:[#allocation5 + $0x48] sm:$0xff]
    %v1162 = vld [vmem:[#allocation5 + $0x50] sm:$0xff]
    %v1163 = vld [vmem:[#allocation5 + $0x58] sm:$0xff]
    %v1164 = vld [vmem:[#allocation5 + $0x60] sm:$0xff]
    %v1165 = vld [vmem:[#allocation5 + $0x68] sm:$0xff]
    %v1166 = vld [vmem:[#allocation5 + $0x70] sm:$0xff]
    %v1167 = vld [vmem:[#allocation5 + $0x78] sm:$0xff]
    %v1168 = vld [vmem:[#allocation5 + $0x80] sm:$0xff]
    %v1169 = vld [vmem:[#allocation5 + $0x88] sm:$0xff]
    %v1170 = vld [vmem:[#allocation5 + $0x90] sm:$0xff]
    %v1171 = vld [vmem:[#allocation5 + $0x98] sm:$0xff]
    %v1172 = vld [vmem:[#allocation5 + $0xa0] sm:$0xff]
    %v1173 = vld [vmem:[#allocation5 + $0xa8] sm:$0xff]
    %v1174 = vld [vmem:[#allocation5 + $0xb0] sm:$0xff]
    %v1175 = vld [vmem:[#allocation5 + $0xb8] sm:$0xff]
    %v1176 = vld [vmem:[#allocation5 + $0xc0] sm:$0xff]
    %v1177 = vld [vmem:[#allocation5 + $0xc8] sm:$0xff]
    %v1178 = vld [vmem:[#allocation5 + $0xd0] sm:$0xff]
    %v1179 = vld [vmem:[#allocation5 + $0xd8] sm:$0xff]
    %v1180 = vld [vmem:[#allocation5 + $0xe0] sm:$0xff]
    %v1181 = vld [vmem:[#allocation5 + $0xe8] sm:$0xff]
    %v1182 = vld [vmem:[#allocation5 + $0xf0] sm:$0xff]
    %v1183 = vld [vmem:[#allocation5 + $0xf8] sm:$0xff]
    %v1185 = vrot.slane %v1151, 2
    %v1219 = vunpack.c.l.b16 %v1152
    %v1220 = vunpack.c.h.b16 %v1152
    %v1221 = vunpack.c.l.b16 %v1153
    %v1222 = vunpack.c.h.b16 %v1153
    %v1223 = vunpack.c.l.b16 %v1154
    %v1224 = vunpack.c.h.b16 %v1154
    %v1225 = vunpack.c.l.b16 %v1155
    %v1226 = vunpack.c.h.b16 %v1155
    %v1227 = vunpack.c.l.b16 %v1156
    %v1228 = vunpack.c.h.b16 %v1156
    %v1229 = vunpack.c.l.b16 %v1157
    %v1230 = vunpack.c.h.b16 %v1157
    %v1231 = vunpack.c.l.b16 %v1158
    %v1232 = vunpack.c.h.b16 %v1158
    %v1233 = vunpack.c.l.b16 %v1159
    %v1234 = vunpack.c.h.b16 %v1159
    %v1235 = vunpack.c.l.b16 %v1160
    %v1236 = vunpack.c.h.b16 %v1160
    %v1237 = vunpack.c.l.b16 %v1161
    %v1238 = vunpack.c.h.b16 %v1161
    %v1239 = vunpack.c.l.b16 %v1162
    %v1240 = vunpack.c.h.b16 %v1162
    %v1241 = vunpack.c.l.b16 %v1163
    %v1242 = vunpack.c.h.b16 %v1163
    %v1243 = vunpack.c.l.b16 %v1164
    %v1244 = vunpack.c.h.b16 %v1164
    %v1245 = vunpack.c.l.b16 %v1165
    %v1246 = vunpack.c.h.b16 %v1165
    %v1247 = vunpack.c.l.b16 %v1166
    %v1248 = vunpack.c.h.b16 %v1166
    %v1249 = vunpack.c.l.b16 %v1167
    %v1250 = vunpack.c.h.b16 %v1167
    %v1251 = vunpack.c.l.b16 %v1168
    %v1252 = vunpack.c.h.b16 %v1168
    %v1253 = vunpack.c.l.b16 %v1169
    %v1254 = vunpack.c.h.b16 %v1169
    %v1255 = vunpack.c.l.b16 %v1170
    %v1256 = vunpack.c.h.b16 %v1170
    %v1257 = vunpack.c.l.b16 %v1171
    %v1258 = vunpack.c.h.b16 %v1171
    %v1259 = vunpack.c.l.b16 %v1172
    %v1260 = vunpack.c.h.b16 %v1172
    %v1261 = vunpack.c.l.b16 %v1173
    %v1262 = vunpack.c.h.b16 %v1173
    %v1263 = vunpack.c.l.b16 %v1174
    %v1264 = vunpack.c.h.b16 %v1174
    %v1265 = vunpack.c.l.b16 %v1175
    %v1266 = vunpack.c.h.b16 %v1175
    %v1267 = vunpack.c.l.b16 %v1176
    %v1268 = vunpack.c.h.b16 %v1176
    %v1269 = vunpack.c.l.b16 %v1177
    %v1270 = vunpack.c.h.b16 %v1177
    %v1271 = vunpack.c.l.b16 %v1178
    %v1272 = vunpack.c.h.b16 %v1178
    %v1273 = vunpack.c.l.b16 %v1179
    %v1274 = vunpack.c.h.b16 %v1179
    %v1275 = vunpack.c.l.b16 %v1180
    %v1276 = vunpack.c.h.b16 %v1180
    %v1277 = vunpack.c.l.b16 %v1181
    %v1278 = vunpack.c.h.b16 %v1181
    %v1279 = vunpack.c.l.b16 %v1182
    %v1280 = vunpack.c.h.b16 %v1182
    %v1281 = vunpack.c.l.b16 %v1183
    %v1282 = vunpack.c.h.b16 %v1183
    %v1283 = vpack.c.b16 %v1223, %v1219
    %v1284 = vpack.c.b16 %v1224, %v1220
    %v1285 = vpack.c.b16 %v1225, %v1221
    %v1286 = vpack.c.b16 %v1226, %v1222
    %v1287 = vpack.c.b16 %v1231, %v1227
    %v1288 = vpack.c.b16 %v1232, %v1228
    %v1289 = vpack.c.b16 %v1233, %v1229
    %v1290 = vpack.c.b16 %v1234, %v1230
    %v1291 = vpack.c.b16 %v1239, %v1235
    %v1292 = vpack.c.b16 %v1240, %v1236
    %v1293 = vpack.c.b16 %v1241, %v1237
    %v1294 = vpack.c.b16 %v1242, %v1238
    %v1295 = vpack.c.b16 %v1247, %v1243
    %v1296 = vpack.c.b16 %v1248, %v1244
    %v1297 = vpack.c.b16 %v1249, %v1245
    %v1298 = vpack.c.b16 %v1250, %v1246
    %v1299 = vpack.c.b16 %v1255, %v1251
    %v1300 = vpack.c.b16 %v1256, %v1252
    %v1301 = vpack.c.b16 %v1257, %v1253
    %v1302 = vpack.c.b16 %v1258, %v1254
    %v1303 = vpack.c.b16 %v1263, %v1259
    %v1304 = vpack.c.b16 %v1264, %v1260
    %v1305 = vpack.c.b16 %v1265, %v1261
    %v1306 = vpack.c.b16 %v1266, %v1262
    %v1307 = vpack.c.b16 %v1271, %v1267
    %v1308 = vpack.c.b16 %v1272, %v1268
    %v1309 = vpack.c.b16 %v1273, %v1269
    %v1310 = vpack.c.b16 %v1274, %v1270
    %v1311 = vpack.c.b16 %v1279, %v1275
    %v1312 = vpack.c.b16 %v1280, %v1276
    %v1313 = vpack.c.b16 %v1281, %v1277
    %v1314 = vpack.c.b16 %v1282, %v1278
    %1347 = vmatprep.subr.bf16.mxu0 %v1284
    %1348 = vmatpush1.bf16.msra.mxu0 %v1283
    %1349 = vmatprep.subr.bf16.mxu0 %v1288
    %1350 = vmatpush1.bf16.msra.mxu0 %v1287
    %1351 = vmatprep.subr.bf16.mxu0 %v1292
    %1352 = vmatpush1.bf16.msra.mxu0 %v1291
    %1353 = vmatprep.subr.bf16.mxu0 %v1296
    %1354 = vmatpush1.bf16.msra.mxu0 %v1295
    %1355 = vmatprep.subr.bf16.mxu0 %v1300
    %1356 = vmatpush1.bf16.msra.mxu0 %v1299
    %1357 = vmatprep.subr.bf16.mxu0 %v1304
    %1358 = vmatpush1.bf16.msra.mxu0 %v1303
    %1359 = vmatprep.subr.bf16.mxu0 %v1308
    %1360 = vmatpush1.bf16.msra.mxu0 %v1307
    %1361 = vmatprep.subr.bf16.mxu0 %v1312
    %1362 = vmatpush1.bf16.msra.mxu0 %v1311
    %1363 = vmatprep.subr.bf16.mxu0 0
    %1364 = vmatpush1.bf16.msra.mxu0 0
    %1365 = vmatprep.subr.bf16.mxu0 0
    %1366 = vmatpush1.bf16.msra.mxu0 0
    %1367 = vmatprep.subr.bf16.mxu0 0
    %1368 = vmatpush1.bf16.msra.mxu0 0
    %1369 = vmatprep.subr.bf16.mxu0 0
    %1370 = vmatpush1.bf16.msra.mxu0 0
    %1371 = vmatprep.subr.bf16.mxu0 0
    %1372 = vmatpush1.bf16.msra.mxu0 0
    %1373 = vmatprep.subr.bf16.mxu0 0
    %1374 = vmatpush1.bf16.msra.mxu0 0
    %1375 = vmatprep.subr.bf16.mxu0 0
    %1376 = vmatpush1.bf16.msra.mxu0 0
    %1377 = vmatprep.subr.bf16.mxu0 0
    %1378 = vmatpush1.bf16.msra.mxu0 0
    %1379 = vmatprep.mubr.bf16.mxu0 0
    %1380 = vmatmul.mubr.bf16.gmra.mrb[0].mxu0 %v1185
    %v1381 = vpop.f32.mrb[0].mxu0
    %v1382 = vadd.f32 0.0, %v1381
    %v1383 = vpop.f32.mrb[0].mxu0
    %v1384 = vadd.f32 0.0, %v1383
    %v1385 = vpop.f32.mrb[0].mxu0
    %v1386 = vpop.f32.mrb[0].mxu0
    %1387 = vdwg.mxu0
    %1388 = vmatprep.subr.bf16.mxu0 %v1286
    %1389 = vmatpush1.bf16.msra.mxu0 %v1285
    %1390 = vmatprep.subr.bf16.mxu0 %v1290
    %1391 = vmatpush1.bf16.msra.mxu0 %v1289
    %1392 = vmatprep.subr.bf16.mxu0 %v1294
    %1393 = vmatpush1.bf16.msra.mxu0 %v1293
    %1394 = vmatprep.subr.bf16.mxu0 %v1298
    %1395 = vmatpush1.bf16.msra.mxu0 %v1297
    %1396 = vmatprep.subr.bf16.mxu0 %v1302
    %1397 = vmatpush1.bf16.msra.mxu0 %v1301
    %1398 = vmatprep.subr.bf16.mxu0 %v1306
    %1399 = vmatpush1.bf16.msra.mxu0 %v1305
    %1400 = vmatprep.subr.bf16.mxu0 %v1310
    %1401 = vmatpush1.bf16.msra.mxu0 %v1309
    %1402 = vmatprep.subr.bf16.mxu0 %v1314
    %1403 = vmatpush1.bf16.msra.mxu0 %v1313
    %1404 = vmatprep.subr.bf16.mxu0 0
    %1405 = vmatpush1.bf16.msra.mxu0 0
    %1406 = vmatprep.subr.bf16.mxu0 0
    %1407 = vmatpush1.bf16.msra.mxu0 0
    %1408 = vmatprep.subr.bf16.mxu0 0
    %1409 = vmatpush1.bf16.msra.mxu0 0
    %1410 = vmatprep.subr.bf16.mxu0 0
    %1411 = vmatpush1.bf16.msra.mxu0 0
    %1412 = vmatprep.subr.bf16.mxu0 0
    %1413 = vmatpush1.bf16.msra.mxu0 0
    %1414 = vmatprep.subr.bf16.mxu0 0
    %1415 = vmatpush1.bf16.msra.mxu0 0
    %1416 = vmatprep.subr.bf16.mxu0 0
    %1417 = vmatpush1.bf16.msra.mxu0 0
    %1418 = vmatprep.subr.bf16.mxu0 0
    %1419 = vmatpush1.bf16.msra.mxu0 0
    %1420 = vmatprep.mubr.bf16.mxu0 0
    %1421 = vmatmul.mubr.bf16.gmra.mrb[0].mxu0 %v1185
    %v1422 = vpop.f32.mrb[0].mxu0
    %v1423 = vadd.f32 0.0, %v1422
    %v1424 = vpop.f32.mrb[0].mxu0
    %v1425 = vadd.f32 0.0, %v1424
    %v1426 = vpop.f32.mrb[0].mxu0
    %v1427 = vpop.f32.mrb[0].mxu0
    %1428 = vdwg.mxu0
    %v1433 = vrot.slane %v1382, 2
    %v1434 = vrot.slane %v1384, 2
    %v1435 = vrot.slane %v1423, 2
    %v1436 = vrot.slane %v1425, 2
    %v1441 = vadd.f32 %v1147, %v1433
    %v1442 = vadd.f32 %v1148, %v1434
    %v1443 = vadd.f32 %v1149, %v1435
    %v1444 = vadd.f32 %v1150, %v1436
    %v1445 = vxor.u32 %v1441, 2147483648
    %v1446 = vmul.f32 %v1445, 1.442695
    %v1447 = vpow.pop %v1446
    %v1448 = vadd.f32 %v1447, 1.0
    %v1449 = vrcp.pop %v1448
    %v1450 = vmul.f32 1.0, %v1449
    %v1451 = vxor.u32 %v1442, 2147483648
    %v1452 = vmul.f32 %v1451, 1.442695
    %v1453 = vpow.pop %v1452
    %v1454 = vadd.f32 %v1453, 1.0
    %v1455 = vrcp.pop %v1454
    %v1456 = vmul.f32 1.0, %v1455
    %v1457 = vtanh.pop %v1443
    %v1458 = vxor.u32 %v1444, 2147483648
    %v1459 = vmul.f32 %v1458, 1.442695
    %v1460 = vpow.pop %v1459
    %v1461 = vadd.f32 %v1460, 1.0
    %v1462 = vrcp.pop %v1461
    %v1463 = vmul.f32 1.0, %v1462
    %v1465 = vrot.slane %v1143, 6
    %v1467 = vmul.f32 %v1456, %v1465
    %v1468 = vmul.f32 %v1450, %v1457
    %v1469 = vadd.f32 %v1467, %v1468
    %v1470 = vtanh.pop %v1469
    %v1471 = vmul.f32 %v1463, %v1470
    %1472 = vst [vmem:[#allocation3] sm:$0xc0] %v1471
    %v1473 = vld [vmem:[#allocation2 + $0x20] sm:$0x3]
    %v1474 = vld [vmem:[#allocation2 + $0x28] sm:$0x3]
    %v1475 = vld [vmem:[#allocation2 + $0x30] sm:$0x3]
    %v1476 = vld [vmem:[#allocation2 + $0x38] sm:$0x3]
    %v1477 = vpack.c.bf16 %v1471, %v1471
    %v1478 = vld [vmem:[#allocation5] sm:$0xff]
    %v1479 = vld [vmem:[#allocation5 + $0x8] sm:$0xff]
    %v1480 = vld [vmem:[#allocation5 + $0x10] sm:$0xff]
    %v1481 = vld [vmem:[#allocation5 + $0x18] sm:$0xff]
    %v1482 = vld [vmem:[#allocation5 + $0x20] sm:$0xff]
    %v1483 = vld [vmem:[#allocation5 + $0x28] sm:$0xff]
    %v1484 = vld [vmem:[#allocation5 + $0x30] sm:$0xff]
    %v1485 = vld [vmem:[#allocation5 + $0x38] sm:$0xff]
    %v1486 = vld [vmem:[#allocation5 + $0x40] sm:$0xff]
    %v1487 = vld [vmem:[#allocation5 + $0x48] sm:$0xff]
    %v1488 = vld [vmem:[#allocation5 + $0x50] sm:$0xff]
    %v1489 = vld [vmem:[#allocation5 + $0x58] sm:$0xff]
    %v1490 = vld [vmem:[#allocation5 + $0x60] sm:$0xff]
    %v1491 = vld [vmem:[#allocation5 + $0x68] sm:$0xff]
    %v1492 = vld [vmem:[#allocation5 + $0x70] sm:$0xff]
    %v1493 = vld [vmem:[#allocation5 + $0x78] sm:$0xff]
    %v1494 = vld [vmem:[#allocation5 + $0x80] sm:$0xff]
    %v1495 = vld [vmem:[#allocation5 + $0x88] sm:$0xff]
    %v1496 = vld [vmem:[#allocation5 + $0x90] sm:$0xff]
    %v1497 = vld [vmem:[#allocation5 + $0x98] sm:$0xff]
    %v1498 = vld [vmem:[#allocation5 + $0xa0] sm:$0xff]
    %v1499 = vld [vmem:[#allocation5 + $0xa8] sm:$0xff]
    %v1500 = vld [vmem:[#allocation5 + $0xb0] sm:$0xff]
    %v1501 = vld [vmem:[#allocation5 + $0xb8] sm:$0xff]
    %v1502 = vld [vmem:[#allocation5 + $0xc0] sm:$0xff]
    %v1503 = vld [vmem:[#allocation5 + $0xc8] sm:$0xff]
    %v1504 = vld [vmem:[#allocation5 + $0xd0] sm:$0xff]
    %v1505 = vld [vmem:[#allocation5 + $0xd8] sm:$0xff]
    %v1506 = vld [vmem:[#allocation5 + $0xe0] sm:$0xff]
    %v1507 = vld [vmem:[#allocation5 + $0xe8] sm:$0xff]
    %v1508 = vld [vmem:[#allocation5 + $0xf0] sm:$0xff]
    %v1509 = vld [vmem:[#allocation5 + $0xf8] sm:$0xff]
    %v1511 = vrot.slane %v1477, 3
    %v1545 = vunpack.c.l.b16 %v1478
    %v1546 = vunpack.c.h.b16 %v1478
    %v1547 = vunpack.c.l.b16 %v1479
    %v1548 = vunpack.c.h.b16 %v1479
    %v1549 = vunpack.c.l.b16 %v1480
    %v1550 = vunpack.c.h.b16 %v1480
    %v1551 = vunpack.c.l.b16 %v1481
    %v1552 = vunpack.c.h.b16 %v1481
    %v1553 = vunpack.c.l.b16 %v1482
    %v1554 = vunpack.c.h.b16 %v1482
    %v1555 = vunpack.c.l.b16 %v1483
    %v1556 = vunpack.c.h.b16 %v1483
    %v1557 = vunpack.c.l.b16 %v1484
    %v1558 = vunpack.c.h.b16 %v1484
    %v1559 = vunpack.c.l.b16 %v1485
    %v1560 = vunpack.c.h.b16 %v1485
    %v1561 = vunpack.c.l.b16 %v1486
    %v1562 = vunpack.c.h.b16 %v1486
    %v1563 = vunpack.c.l.b16 %v1487
    %v1564 = vunpack.c.h.b16 %v1487
    %v1565 = vunpack.c.l.b16 %v1488
    %v1566 = vunpack.c.h.b16 %v1488
    %v1567 = vunpack.c.l.b16 %v1489
    %v1568 = vunpack.c.h.b16 %v1489
    %v1569 = vunpack.c.l.b16 %v1490
    %v1570 = vunpack.c.h.b16 %v1490
    %v1571 = vunpack.c.l.b16 %v1491
    %v1572 = vunpack.c.h.b16 %v1491
    %v1573 = vunpack.c.l.b16 %v1492
    %v1574 = vunpack.c.h.b16 %v1492
    %v1575 = vunpack.c.l.b16 %v1493
    %v1576 = vunpack.c.h.b16 %v1493
    %v1577 = vunpack.c.l.b16 %v1494
    %v1578 = vunpack.c.h.b16 %v1494
    %v1579 = vunpack.c.l.b16 %v1495
    %v1580 = vunpack.c.h.b16 %v1495
    %v1581 = vunpack.c.l.b16 %v1496
    %v1582 = vunpack.c.h.b16 %v1496
    %v1583 = vunpack.c.l.b16 %v1497
    %v1584 = vunpack.c.h.b16 %v1497
    %v1585 = vunpack.c.l.b16 %v1498
    %v1586 = vunpack.c.h.b16 %v1498
    %v1587 = vunpack.c.l.b16 %v1499
    %v1588 = vunpack.c.h.b16 %v1499
    %v1589 = vunpack.c.l.b16 %v1500
    %v1590 = vunpack.c.h.b16 %v1500
    %v1591 = vunpack.c.l.b16 %v1501
    %v1592 = vunpack.c.h.b16 %v1501
    %v1593 = vunpack.c.l.b16 %v1502
    %v1594 = vunpack.c.h.b16 %v1502
    %v1595 = vunpack.c.l.b16 %v1503
    %v1596 = vunpack.c.h.b16 %v1503
    %v1597 = vunpack.c.l.b16 %v1504
    %v1598 = vunpack.c.h.b16 %v1504
    %v1599 = vunpack.c.l.b16 %v1505
    %v1600 = vunpack.c.h.b16 %v1505
    %v1601 = vunpack.c.l.b16 %v1506
    %v1602 = vunpack.c.h.b16 %v1506
    %v1603 = vunpack.c.l.b16 %v1507
    %v1604 = vunpack.c.h.b16 %v1507
    %v1605 = vunpack.c.l.b16 %v1508
    %v1606 = vunpack.c.h.b16 %v1508
    %v1607 = vunpack.c.l.b16 %v1509
    %v1608 = vunpack.c.h.b16 %v1509
    %v1609 = vpack.c.b16 %v1549, %v1545
    %v1610 = vpack.c.b16 %v1550, %v1546
    %v1611 = vpack.c.b16 %v1551, %v1547
    %v1612 = vpack.c.b16 %v1552, %v1548
    %v1613 = vpack.c.b16 %v1557, %v1553
    %v1614 = vpack.c.b16 %v1558, %v1554
    %v1615 = vpack.c.b16 %v1559, %v1555
    %v1616 = vpack.c.b16 %v1560, %v1556
    %v1617 = vpack.c.b16 %v1565, %v1561
    %v1618 = vpack.c.b16 %v1566, %v1562
    %v1619 = vpack.c.b16 %v1567, %v1563
    %v1620 = vpack.c.b16 %v1568, %v1564
    %v1621 = vpack.c.b16 %v1573, %v1569
    %v1622 = vpack.c.b16 %v1574, %v1570
    %v1623 = vpack.c.b16 %v1575, %v1571
    %v1624 = vpack.c.b16 %v1576, %v1572
    %v1625 = vpack.c.b16 %v1581, %v1577
    %v1626 = vpack.c.b16 %v1582, %v1578
    %v1627 = vpack.c.b16 %v1583, %v1579
    %v1628 = vpack.c.b16 %v1584, %v1580
    %v1629 = vpack.c.b16 %v1589, %v1585
    %v1630 = vpack.c.b16 %v1590, %v1586
    %v1631 = vpack.c.b16 %v1591, %v1587
    %v1632 = vpack.c.b16 %v1592, %v1588
    %v1633 = vpack.c.b16 %v1597, %v1593
    %v1634 = vpack.c.b16 %v1598, %v1594
    %v1635 = vpack.c.b16 %v1599, %v1595
    %v1636 = vpack.c.b16 %v1600, %v1596
    %v1637 = vpack.c.b16 %v1605, %v1601
    %v1638 = vpack.c.b16 %v1606, %v1602
    %v1639 = vpack.c.b16 %v1607, %v1603
    %v1640 = vpack.c.b16 %v1608, %v1604
    %1673 = vmatprep.subr.bf16.mxu0 %v1610
    %1674 = vmatpush1.bf16.msra.mxu0 %v1609
    %1675 = vmatprep.subr.bf16.mxu0 %v1614
    %1676 = vmatpush1.bf16.msra.mxu0 %v1613
    %1677 = vmatprep.subr.bf16.mxu0 %v1618
    %1678 = vmatpush1.bf16.msra.mxu0 %v1617
    %1679 = vmatprep.subr.bf16.mxu0 %v1622
    %1680 = vmatpush1.bf16.msra.mxu0 %v1621
    %1681 = vmatprep.subr.bf16.mxu0 %v1626
    %1682 = vmatpush1.bf16.msra.mxu0 %v1625
    %1683 = vmatprep.subr.bf16.mxu0 %v1630
    %1684 = vmatpush1.bf16.msra.mxu0 %v1629
    %1685 = vmatprep.subr.bf16.mxu0 %v1634
    %1686 = vmatpush1.bf16.msra.mxu0 %v1633
    %1687 = vmatprep.subr.bf16.mxu0 %v1638
    %1688 = vmatpush1.bf16.msra.mxu0 %v1637
    %1689 = vmatprep.subr.bf16.mxu0 0
    %1690 = vmatpush1.bf16.msra.mxu0 0
    %1691 = vmatprep.subr.bf16.mxu0 0
    %1692 = vmatpush1.bf16.msra.mxu0 0
    %1693 = vmatprep.subr.bf16.mxu0 0
    %1694 = vmatpush1.bf16.msra.mxu0 0
    %1695 = vmatprep.subr.bf16.mxu0 0
    %1696 = vmatpush1.bf16.msra.mxu0 0
    %1697 = vmatprep.subr.bf16.mxu0 0
    %1698 = vmatpush1.bf16.msra.mxu0 0
    %1699 = vmatprep.subr.bf16.mxu0 0
    %1700 = vmatpush1.bf16.msra.mxu0 0
    %1701 = vmatprep.subr.bf16.mxu0 0
    %1702 = vmatpush1.bf16.msra.mxu0 0
    %1703 = vmatprep.subr.bf16.mxu0 0
    %1704 = vmatpush1.bf16.msra.mxu0 0
    %1705 = vmatprep.mubr.bf16.mxu0 0
    %1706 = vmatmul.mubr.bf16.gmra.mrb[0].mxu0 %v1511
    %v1707 = vpop.f32.mrb[0].mxu0
    %v1708 = vadd.f32 0.0, %v1707
    %v1709 = vpop.f32.mrb[0].mxu0
    %v1710 = vadd.f32 0.0, %v1709
    %v1711 = vpop.f32.mrb[0].mxu0
    %v1712 = vpop.f32.mrb[0].mxu0
    %1713 = vdwg.mxu0
    %1714 = vmatprep.subr.bf16.mxu0 %v1612
    %1715 = vmatpush1.bf16.msra.mxu0 %v1611
    %1716 = vmatprep.subr.bf16.mxu0 %v1616
    %1717 = vmatpush1.bf16.msra.mxu0 %v1615
    %1718 = vmatprep.subr.bf16.mxu0 %v1620
    %1719 = vmatpush1.bf16.msra.mxu0 %v1619
    %1720 = vmatprep.subr.bf16.mxu0 %v1624
    %1721 = vmatpush1.bf16.msra.mxu0 %v1623
    %1722 = vmatprep.subr.bf16.mxu0 %v1628
    %1723 = vmatpush1.bf16.msra.mxu0 %v1627
    %1724 = vmatprep.subr.bf16.mxu0 %v1632
    %1725 = vmatpush1.bf16.msra.mxu0 %v1631
    %1726 = vmatprep.subr.bf16.mxu0 %v1636
    %1727 = vmatpush1.bf16.msra.mxu0 %v1635
    %1728 = vmatprep.subr.bf16.mxu0 %v1640
    %1729 = vmatpush1.bf16.msra.mxu0 %v1639
    %1730 = vmatprep.subr.bf16.mxu0 0
    %1731 = vmatpush1.bf16.msra.mxu0 0
    %1732 = vmatprep.subr.bf16.mxu0 0
    %1733 = vmatpush1.bf16.msra.mxu0 0
    %1734 = vmatprep.subr.bf16.mxu0 0
    %1735 = vmatpush1.bf16.msra.mxu0 0
    %1736 = vmatprep.subr.bf16.mxu0 0
    %1737 = vmatpush1.bf16.msra.mxu0 0
    %1738 = vmatprep.subr.bf16.mxu0 0
    %1739 = vmatpush1.bf16.msra.mxu0 0
    %1740 = vmatprep.subr.bf16.mxu0 0
    %1741 = vmatpush1.bf16.msra.mxu0 0
    %1742 = vmatprep.subr.bf16.mxu0 0
    %1743 = vmatpush1.bf16.msra.mxu0 0
    %1744 = vmatprep.subr.bf16.mxu0 0
    %1745 = vmatpush1.bf16.msra.mxu0 0
    %1746 = vmatprep.mubr.bf16.mxu0 0
    %1747 = vmatmul.mubr.bf16.gmra.mrb[0].mxu0 %v1511
    %v1748 = vpop.f32.mrb[0].mxu0
    %v1749 = vadd.f32 0.0, %v1748
    %v1750 = vpop.f32.mrb[0].mxu0
    %v1751 = vadd.f32 0.0, %v1750
    %v1752 = vpop.f32.mrb[0].mxu0
    %v1753 = vpop.f32.mrb[0].mxu0
    %1754 = vdwg.mxu0
    %v1755 = vadd.f32 %v1473, %v1708
    %v1756 = vadd.f32 %v1474, %v1710
    %v1757 = vadd.f32 %v1475, %v1749
    %v1758 = vadd.f32 %v1476, %v1751
    %v1759 = vxor.u32 %v1755, 2147483648
    %v1760 = vmul.f32 %v1759, 1.442695
    %v1761 = vpow.pop %v1760
    %v1762 = vadd.f32 %v1761, 1.0
    %v1763 = vrcp.pop %v1762
    %v1764 = vmul.f32 1.0, %v1763
    %v1765 = vxor.u32 %v1756, 2147483648
    %v1766 = vmul.f32 %v1765, 1.442695
    %v1767 = vpow.pop %v1766
    %v1768 = vadd.f32 %v1767, 1.0
    %v1769 = vrcp.pop %v1768
    %v1770 = vmul.f32 1.0, %v1769
    %v1771 = vtanh.pop %v1757
    %v1772 = vxor.u32 %v1758, 2147483648
    %v1773 = vmul.f32 %v1772, 1.442695
    %v1774 = vpow.pop %v1773
    %v1775 = vadd.f32 %v1774, 1.0
    %v1776 = vrcp.pop %v1775
    %v1777 = vmul.f32 1.0, %v1776
    %v1779 = vrot.slane %v1469, 6
    %v1781 = vmul.f32 %v1770, %v1779
    %v1782 = vmul.f32 %v1764, %v1771
    %v1783 = vadd.f32 %v1781, %v1782
    %v1784 = vtanh.pop %v1783
    %v1785 = vmul.f32 %v1777, %v1784
    %1786 = vst [vmem:[#allocation3 + $0x8] sm:$0x3] %v1785
    %v1787 = vld [vmem:[#allocation2 + $0x20] sm:$0xc]
    %v1788 = vld [vmem:[#allocation2 + $0x28] sm:$0xc]
    %v1789 = vld [vmem:[#allocation2 + $0x30] sm:$0xc]
    %v1790 = vld [vmem:[#allocation2 + $0x38] sm:$0xc]
    %v1791 = vpack.c.bf16 %v1785, %v1785
    %v1792 = vld [vmem:[#allocation5] sm:$0xff]
    %v1793 = vld [vmem:[#allocation5 + $0x8] sm:$0xff]
    %v1794 = vld [vmem:[#allocation5 + $0x10] sm:$0xff]
    %v1795 = vld [vmem:[#allocation5 + $0x18] sm:$0xff]
    %v1796 = vld [vmem:[#allocation5 + $0x20] sm:$0xff]
    %v1797 = vld [vmem:[#allocation5 + $0x28] sm:$0xff]
    %v1798 = vld [vmem:[#allocation5 + $0x30] sm:$0xff]
    %v1799 = vld [vmem:[#allocation5 + $0x38] sm:$0xff]
    %v1800 = vld [vmem:[#allocation5 + $0x40] sm:$0xff]
    %v1801 = vld [vmem:[#allocation5 + $0x48] sm:$0xff]
    %v1802 = vld [vmem:[#allocation5 + $0x50] sm:$0xff]
    %v1803 = vld [vmem:[#allocation5 + $0x58] sm:$0xff]
    %v1804 = vld [vmem:[#allocation5 + $0x60] sm:$0xff]
    %v1805 = vld [vmem:[#allocation5 + $0x68] sm:$0xff]
    %v1806 = vld [vmem:[#allocation5 + $0x70] sm:$0xff]
    %v1807 = vld [vmem:[#allocation5 + $0x78] sm:$0xff]
    %v1808 = vld [vmem:[#allocation5 + $0x80] sm:$0xff]
    %v1809 = vld [vmem:[#allocation5 + $0x88] sm:$0xff]
    %v1810 = vld [vmem:[#allocation5 + $0x90] sm:$0xff]
    %v1811 = vld [vmem:[#allocation5 + $0x98] sm:$0xff]
    %v1812 = vld [vmem:[#allocation5 + $0xa0] sm:$0xff]
    %v1813 = vld [vmem:[#allocation5 + $0xa8] sm:$0xff]
    %v1814 = vld [vmem:[#allocation5 + $0xb0] sm:$0xff]
    %v1815 = vld [vmem:[#allocation5 + $0xb8] sm:$0xff]
    %v1816 = vld [vmem:[#allocation5 + $0xc0] sm:$0xff]
    %v1817 = vld [vmem:[#allocation5 + $0xc8] sm:$0xff]
    %v1818 = vld [vmem:[#allocation5 + $0xd0] sm:$0xff]
    %v1819 = vld [vmem:[#allocation5 + $0xd8] sm:$0xff]
    %v1820 = vld [vmem:[#allocation5 + $0xe0] sm:$0xff]
    %v1821 = vld [vmem:[#allocation5 + $0xe8] sm:$0xff]
    %v1822 = vld [vmem:[#allocation5 + $0xf0] sm:$0xff]
    %v1823 = vld [vmem:[#allocation5 + $0xf8] sm:$0xff]
    %v1856 = vunpack.c.l.b16 %v1792
    %v1857 = vunpack.c.h.b16 %v1792
    %v1858 = vunpack.c.l.b16 %v1793
    %v1859 = vunpack.c.h.b16 %v1793
    %v1860 = vunpack.c.l.b16 %v1794
    %v1861 = vunpack.c.h.b16 %v1794
    %v1862 = vunpack.c.l.b16 %v1795
    %v1863 = vunpack.c.h.b16 %v1795
    %v1864 = vunpack.c.l.b16 %v1796
    %v1865 = vunpack.c.h.b16 %v1796
    %v1866 = vunpack.c.l.b16 %v1797
    %v1867 = vunpack.c.h.b16 %v1797
    %v1868 = vunpack.c.l.b16 %v1798
    %v1869 = vunpack.c.h.b16 %v1798
    %v1870 = vunpack.c.l.b16 %v1799
    %v1871 = vunpack.c.h.b16 %v1799
    %v1872 = vunpack.c.l.b16 %v1800
    %v1873 = vunpack.c.h.b16 %v1800
    %v1874 = vunpack.c.l.b16 %v1801
    %v1875 = vunpack.c.h.b16 %v1801
    %v1876 = vunpack.c.l.b16 %v1802
    %v1877 = vunpack.c.h.b16 %v1802
    %v1878 = vunpack.c.l.b16 %v1803
    %v1879 = vunpack.c.h.b16 %v1803
    %v1880 = vunpack.c.l.b16 %v1804
    %v1881 = vunpack.c.h.b16 %v1804
    %v1882 = vunpack.c.l.b16 %v1805
    %v1883 = vunpack.c.h.b16 %v1805
    %v1884 = vunpack.c.l.b16 %v1806
    %v1885 = vunpack.c.h.b16 %v1806
    %v1886 = vunpack.c.l.b16 %v1807
    %v1887 = vunpack.c.h.b16 %v1807
    %v1888 = vunpack.c.l.b16 %v1808
    %v1889 = vunpack.c.h.b16 %v1808
    %v1890 = vunpack.c.l.b16 %v1809
    %v1891 = vunpack.c.h.b16 %v1809
    %v1892 = vunpack.c.l.b16 %v1810
    %v1893 = vunpack.c.h.b16 %v1810
    %v1894 = vunpack.c.l.b16 %v1811
    %v1895 = vunpack.c.h.b16 %v1811
    %v1896 = vunpack.c.l.b16 %v1812
    %v1897 = vunpack.c.h.b16 %v1812
    %v1898 = vunpack.c.l.b16 %v1813
    %v1899 = vunpack.c.h.b16 %v1813
    %v1900 = vunpack.c.l.b16 %v1814
    %v1901 = vunpack.c.h.b16 %v1814
    %v1902 = vunpack.c.l.b16 %v1815
    %v1903 = vunpack.c.h.b16 %v1815
    %v1904 = vunpack.c.l.b16 %v1816
    %v1905 = vunpack.c.h.b16 %v1816
    %v1906 = vunpack.c.l.b16 %v1817
    %v1907 = vunpack.c.h.b16 %v1817
    %v1908 = vunpack.c.l.b16 %v1818
    %v1909 = vunpack.c.h.b16 %v1818
    %v1910 = vunpack.c.l.b16 %v1819
    %v1911 = vunpack.c.h.b16 %v1819
    %v1912 = vunpack.c.l.b16 %v1820
    %v1913 = vunpack.c.h.b16 %v1820
    %v1914 = vunpack.c.l.b16 %v1821
    %v1915 = vunpack.c.h.b16 %v1821
    %v1916 = vunpack.c.l.b16 %v1822
    %v1917 = vunpack.c.h.b16 %v1822
    %v1918 = vunpack.c.l.b16 %v1823
    %v1919 = vunpack.c.h.b16 %v1823
    %v1920 = vpack.c.b16 %v1860, %v1856
    %v1921 = vpack.c.b16 %v1861, %v1857
    %v1922 = vpack.c.b16 %v1862, %v1858
    %v1923 = vpack.c.b16 %v1863, %v1859
    %v1924 = vpack.c.b16 %v1868, %v1864
    %v1925 = vpack.c.b16 %v1869, %v1865
    %v1926 = vpack.c.b16 %v1870, %v1866
    %v1927 = vpack.c.b16 %v1871, %v1867
    %v1928 = vpack.c.b16 %v1876, %v1872
    %v1929 = vpack.c.b16 %v1877, %v1873
    %v1930 = vpack.c.b16 %v1878, %v1874
    %v1931 = vpack.c.b16 %v1879, %v1875
    %v1932 = vpack.c.b16 %v1884, %v1880
    %v1933 = vpack.c.b16 %v1885, %v1881
    %v1934 = vpack.c.b16 %v1886, %v1882
    %v1935 = vpack.c.b16 %v1887, %v1883
    %v1936 = vpack.c.b16 %v1892, %v1888
    %v1937 = vpack.c.b16 %v1893, %v1889
    %v1938 = vpack.c.b16 %v1894, %v1890
    %v1939 = vpack.c.b16 %v1895, %v1891
    %v1940 = vpack.c.b16 %v1900, %v1896
    %v1941 = vpack.c.b16 %v1901, %v1897
    %v1942 = vpack.c.b16 %v1902, %v1898
    %v1943 = vpack.c.b16 %v1903, %v1899
    %v1944 = vpack.c.b16 %v1908, %v1904
    %v1945 = vpack.c.b16 %v1909, %v1905
    %v1946 = vpack.c.b16 %v1910, %v1906
    %v1947 = vpack.c.b16 %v1911, %v1907
    %v1948 = vpack.c.b16 %v1916, %v1912
    %v1949 = vpack.c.b16 %v1917, %v1913
    %v1950 = vpack.c.b16 %v1918, %v1914
    %v1951 = vpack.c.b16 %v1919, %v1915
    %1984 = vmatprep.subr.bf16.mxu0 %v1921
    %1985 = vmatpush1.bf16.msra.mxu0 %v1920
    %1986 = vmatprep.subr.bf16.mxu0 %v1925
    %1987 = vmatpush1.bf16.msra.mxu0 %v1924
    %1988 = vmatprep.subr.bf16.mxu0 %v1929
    %1989 = vmatpush1.bf16.msra.mxu0 %v1928
    %1990 = vmatprep.subr.bf16.mxu0 %v1933
    %1991 = vmatpush1.bf16.msra.mxu0 %v1932
    %1992 = vmatprep.subr.bf16.mxu0 %v1937
    %1993 = vmatpush1.bf16.msra.mxu0 %v1936
    %1994 = vmatprep.subr.bf16.mxu0 %v1941
    %1995 = vmatpush1.bf16.msra.mxu0 %v1940
    %1996 = vmatprep.subr.bf16.mxu0 %v1945
    %1997 = vmatpush1.bf16.msra.mxu0 %v1944
    %1998 = vmatprep.subr.bf16.mxu0 %v1949
    %1999 = vmatpush1.bf16.msra.mxu0 %v1948
    %2000 = vmatprep.subr.bf16.mxu0 0
    %2001 = vmatpush1.bf16.msra.mxu0 0
    %2002 = vmatprep.subr.bf16.mxu0 0
    %2003 = vmatpush1.bf16.msra.mxu0 0
    %2004 = vmatprep.subr.bf16.mxu0 0
    %2005 = vmatpush1.bf16.msra.mxu0 0
    %2006 = vmatprep.subr.bf16.mxu0 0
    %2007 = vmatpush1.bf16.msra.mxu0 0
    %2008 = vmatprep.subr.bf16.mxu0 0
    %2009 = vmatpush1.bf16.msra.mxu0 0
    %2010 = vmatprep.subr.bf16.mxu0 0
    %2011 = vmatpush1.bf16.msra.mxu0 0
    %2012 = vmatprep.subr.bf16.mxu0 0
    %2013 = vmatpush1.bf16.msra.mxu0 0
    %2014 = vmatprep.subr.bf16.mxu0 0
    %2015 = vmatpush1.bf16.msra.mxu0 0
    %2016 = vmatprep.mubr.bf16.mxu0 0
    %2017 = vmatmul.mubr.bf16.gmra.mrb[0].mxu0 %v1791
    %v2018 = vpop.f32.mrb[0].mxu0
    %v2019 = vadd.f32 0.0, %v2018
    %v2020 = vpop.f32.mrb[0].mxu0
    %v2021 = vadd.f32 0.0, %v2020
    %v2022 = vpop.f32.mrb[0].mxu0
    %v2023 = vpop.f32.mrb[0].mxu0
    %2024 = vdwg.mxu0
    %2025 = vmatprep.subr.bf16.mxu0 %v1923
    %2026 = vmatpush1.bf16.msra.mxu0 %v1922
    %2027 = vmatprep.subr.bf16.mxu0 %v1927
    %2028 = vmatpush1.bf16.msra.mxu0 %v1926
    %2029 = vmatprep.subr.bf16.mxu0 %v1931
    %2030 = vmatpush1.bf16.msra.mxu0 %v1930
    %2031 = vmatprep.subr.bf16.mxu0 %v1935
    %2032 = vmatpush1.bf16.msra.mxu0 %v1934
    %2033 = vmatprep.subr.bf16.mxu0 %v1939
    %2034 = vmatpush1.bf16.msra.mxu0 %v1938
    %2035 = vmatprep.subr.bf16.mxu0 %v1943
    %2036 = vmatpush1.bf16.msra.mxu0 %v1942
    %2037 = vmatprep.subr.bf16.mxu0 %v1947
    %2038 = vmatpush1.bf16.msra.mxu0 %v1946
    %2039 = vmatprep.subr.bf16.mxu0 %v1951
    %2040 = vmatpush1.bf16.msra.mxu0 %v1950
    %2041 = vmatprep.subr.bf16.mxu0 0
    %2042 = vmatpush1.bf16.msra.mxu0 0
    %2043 = vmatprep.subr.bf16.mxu0 0
    %2044 = vmatpush1.bf16.msra.mxu0 0
    %2045 = vmatprep.subr.bf16.mxu0 0
    %2046 = vmatpush1.bf16.msra.mxu0 0
    %2047 = vmatprep.subr.bf16.mxu0 0
    %2048 = vmatpush1.bf16.msra.mxu0 0
    %2049 = vmatprep.subr.bf16.mxu0 0
    %2050 = vmatpush1.bf16.msra.mxu0 0
    %2051 = vmatprep.subr.bf16.mxu0 0
    %2052 = vmatpush1.bf16.msra.mxu0 0
    %2053 = vmatprep.subr.bf16.mxu0 0
    %2054 = vmatpush1.bf16.msra.mxu0 0
    %2055 = vmatprep.subr.bf16.mxu0 0
    %2056 = vmatpush1.bf16.msra.mxu0 0
    %2057 = vmatprep.mubr.bf16.mxu0 0
    %2058 = vmatmul.mubr.bf16.gmra.mrb[0].mxu0 %v1791
    %v2059 = vpop.f32.mrb[0].mxu0
    %v2060 = vadd.f32 0.0, %v2059
    %v2061 = vpop.f32.mrb[0].mxu0
    %v2062 = vadd.f32 0.0, %v2061
    %v2063 = vpop.f32.mrb[0].mxu0
    %v2064 = vpop.f32.mrb[0].mxu0
    %2065 = vdwg.mxu0
    %v2070 = vrot.slane %v2019, 6
    %v2071 = vrot.slane %v2021, 6
    %v2072 = vrot.slane %v2060, 6
    %v2073 = vrot.slane %v2062, 6
    %v2078 = vadd.f32 %v1787, %v2070
    %v2079 = vadd.f32 %v1788, %v2071
    %v2080 = vadd.f32 %v1789, %v2072
    %v2081 = vadd.f32 %v1790, %v2073
    %v2082 = vxor.u32 %v2078, 2147483648
    %v2083 = vmul.f32 %v2082, 1.442695
    %v2084 = vpow.pop %v2083
    %v2085 = vadd.f32 %v2084, 1.0
    %v2086 = vrcp.pop %v2085
    %v2087 = vmul.f32 1.0, %v2086
    %v2088 = vxor.u32 %v2079, 2147483648
    %v2089 = vmul.f32 %v2088, 1.442695
    %v2090 = vpow.pop %v2089
    %v2091 = vadd.f32 %v2090, 1.0
    %v2092 = vrcp.pop %v2091
    %v2093 = vmul.f32 1.0, %v2092
    %v2094 = vtanh.pop %v2080
    %v2095 = vxor.u32 %v2081, 2147483648
    %v2096 = vmul.f32 %v2095, 1.442695
    %v2097 = vpow.pop %v2096
    %v2098 = vadd.f32 %v2097, 1.0
    %v2099 = vrcp.pop %v2098
    %v2100 = vmul.f32 1.0, %v2099
    %v2102 = vrot.slane %v1783, 6
    %v2104 = vmul.f32 %v2093, %v2102
    %v2105 = vmul.f32 %v2087, %v2094
    %v2106 = vadd.f32 %v2104, %v2105
    %v2107 = vtanh.pop %v2106
    %v2108 = vmul.f32 %v2100, %v2107
    %2109 = vst [vmem:[#allocation3 + $0x8] sm:$0xc] %v2108
    %v2110 = vld [vmem:[#allocation2 + $0x20] sm:$0x30]
    %v2111 = vld [vmem:[#allocation2 + $0x28] sm:$0x30]
    %v2112 = vld [vmem:[#allocation2 + $0x30] sm:$0x30]
    %v2113 = vld [vmem:[#allocation2 + $0x38] sm:$0x30]
    %v2114 = vpack.c.bf16 %v2108, %v2108
    %v2115 = vld [vmem:[#allocation5] sm:$0xff]
    %v2116 = vld [vmem:[#allocation5 + $0x8] sm:$0xff]
    %v2117 = vld [vmem:[#allocation5 + $0x10] sm:$0xff]
    %v2118 = vld [vmem:[#allocation5 + $0x18] sm:$0xff]
    %v2119 = vld [vmem:[#allocation5 + $0x20] sm:$0xff]
    %v2120 = vld [vmem:[#allocation5 + $0x28] sm:$0xff]
    %v2121 = vld [vmem:[#allocation5 + $0x30] sm:$0xff]
    %v2122 = vld [vmem:[#allocation5 + $0x38] sm:$0xff]
    %v2123 = vld [vmem:[#allocation5 + $0x40] sm:$0xff]
    %v2124 = vld [vmem:[#allocation5 + $0x48] sm:$0xff]
    %v2125 = vld [vmem:[#allocation5 + $0x50] sm:$0xff]
    %v2126 = vld [vmem:[#allocation5 + $0x58] sm:$0xff]
    %v2127 = vld [vmem:[#allocation5 + $0x60] sm:$0xff]
    %v2128 = vld [vmem:[#allocation5 + $0x68] sm:$0xff]
    %v2129 = vld [vmem:[#allocation5 + $0x70] sm:$0xff]
    %v2130 = vld [vmem:[#allocation5 + $0x78] sm:$0xff]
    %v2131 = vld [vmem:[#allocation5 + $0x80] sm:$0xff]
    %v2132 = vld [vmem:[#allocation5 + $0x88] sm:$0xff]
    %v2133 = vld [vmem:[#allocation5 + $0x90] sm:$0xff]
    %v2134 = vld [vmem:[#allocation5 + $0x98] sm:$0xff]
    %v2135 = vld [vmem:[#allocation5 + $0xa0] sm:$0xff]
    %v2136 = vld [vmem:[#allocation5 + $0xa8] sm:$0xff]
    %v2137 = vld [vmem:[#allocation5 + $0xb0] sm:$0xff]
    %v2138 = vld [vmem:[#allocation5 + $0xb8] sm:$0xff]
    %v2139 = vld [vmem:[#allocation5 + $0xc0] sm:$0xff]
    %v2140 = vld [vmem:[#allocation5 + $0xc8] sm:$0xff]
    %v2141 = vld [vmem:[#allocation5 + $0xd0] sm:$0xff]
    %v2142 = vld [vmem:[#allocation5 + $0xd8] sm:$0xff]
    %v2143 = vld [vmem:[#allocation5 + $0xe0] sm:$0xff]
    %v2144 = vld [vmem:[#allocation5 + $0xe8] sm:$0xff]
    %v2145 = vld [vmem:[#allocation5 + $0xf0] sm:$0xff]
    %v2146 = vld [vmem:[#allocation5 + $0xf8] sm:$0xff]
    %v2148 = vrot.slane %v2114, 1
    %v2182 = vunpack.c.l.b16 %v2115
    %v2183 = vunpack.c.h.b16 %v2115
    %v2184 = vunpack.c.l.b16 %v2116
    %v2185 = vunpack.c.h.b16 %v2116
    %v2186 = vunpack.c.l.b16 %v2117
    %v2187 = vunpack.c.h.b16 %v2117
    %v2188 = vunpack.c.l.b16 %v2118
    %v2189 = vunpack.c.h.b16 %v2118
    %v2190 = vunpack.c.l.b16 %v2119
    %v2191 = vunpack.c.h.b16 %v2119
    %v2192 = vunpack.c.l.b16 %v2120
    %v2193 = vunpack.c.h.b16 %v2120
    %v2194 = vunpack.c.l.b16 %v2121
    %v2195 = vunpack.c.h.b16 %v2121
    %v2196 = vunpack.c.l.b16 %v2122
    %v2197 = vunpack.c.h.b16 %v2122
    %v2198 = vunpack.c.l.b16 %v2123
    %v2199 = vunpack.c.h.b16 %v2123
    %v2200 = vunpack.c.l.b16 %v2124
    %v2201 = vunpack.c.h.b16 %v2124
    %v2202 = vunpack.c.l.b16 %v2125
    %v2203 = vunpack.c.h.b16 %v2125
    %v2204 = vunpack.c.l.b16 %v2126
    %v2205 = vunpack.c.h.b16 %v2126
    %v2206 = vunpack.c.l.b16 %v2127
    %v2207 = vunpack.c.h.b16 %v2127
    %v2208 = vunpack.c.l.b16 %v2128
    %v2209 = vunpack.c.h.b16 %v2128
    %v2210 = vunpack.c.l.b16 %v2129
    %v2211 = vunpack.c.h.b16 %v2129
    %v2212 = vunpack.c.l.b16 %v2130
    %v2213 = vunpack.c.h.b16 %v2130
    %v2214 = vunpack.c.l.b16 %v2131
    %v2215 = vunpack.c.h.b16 %v2131
    %v2216 = vunpack.c.l.b16 %v2132
    %v2217 = vunpack.c.h.b16 %v2132
    %v2218 = vunpack.c.l.b16 %v2133
    %v2219 = vunpack.c.h.b16 %v2133
    %v2220 = vunpack.c.l.b16 %v2134
    %v2221 = vunpack.c.h.b16 %v2134
    %v2222 = vunpack.c.l.b16 %v2135
    %v2223 = vunpack.c.h.b16 %v2135
    %v2224 = vunpack.c.l.b16 %v2136
    %v2225 = vunpack.c.h.b16 %v2136
    %v2226 = vunpack.c.l.b16 %v2137
    %v2227 = vunpack.c.h.b16 %v2137
    %v2228 = vunpack.c.l.b16 %v2138
    %v2229 = vunpack.c.h.b16 %v2138
    %v2230 = vunpack.c.l.b16 %v2139
    %v2231 = vunpack.c.h.b16 %v2139
    %v2232 = vunpack.c.l.b16 %v2140
    %v2233 = vunpack.c.h.b16 %v2140
    %v2234 = vunpack.c.l.b16 %v2141
    %v2235 = vunpack.c.h.b16 %v2141
    %v2236 = vunpack.c.l.b16 %v2142
    %v2237 = vunpack.c.h.b16 %v2142
    %v2238 = vunpack.c.l.b16 %v2143
    %v2239 = vunpack.c.h.b16 %v2143
    %v2240 = vunpack.c.l.b16 %v2144
    %v2241 = vunpack.c.h.b16 %v2144
    %v2242 = vunpack.c.l.b16 %v2145
    %v2243 = vunpack.c.h.b16 %v2145
    %v2244 = vunpack.c.l.b16 %v2146
    %v2245 = vunpack.c.h.b16 %v2146
    %v2246 = vpack.c.b16 %v2186, %v2182
    %v2247 = vpack.c.b16 %v2187, %v2183
    %v2248 = vpack.c.b16 %v2188, %v2184
    %v2249 = vpack.c.b16 %v2189, %v2185
    %v2250 = vpack.c.b16 %v2194, %v2190
    %v2251 = vpack.c.b16 %v2195, %v2191
    %v2252 = vpack.c.b16 %v2196, %v2192
    %v2253 = vpack.c.b16 %v2197, %v2193
    %v2254 = vpack.c.b16 %v2202, %v2198
    %v2255 = vpack.c.b16 %v2203, %v2199
    %v2256 = vpack.c.b16 %v2204, %v2200
    %v2257 = vpack.c.b16 %v2205, %v2201
    %v2258 = vpack.c.b16 %v2210, %v2206
    %v2259 = vpack.c.b16 %v2211, %v2207
    %v2260 = vpack.c.b16 %v2212, %v2208
    %v2261 = vpack.c.b16 %v2213, %v2209
    %v2262 = vpack.c.b16 %v2218, %v2214
    %v2263 = vpack.c.b16 %v2219, %v2215
    %v2264 = vpack.c.b16 %v2220, %v2216
    %v2265 = vpack.c.b16 %v2221, %v2217
    %v2266 = vpack.c.b16 %v2226, %v2222
    %v2267 = vpack.c.b16 %v2227, %v2223
    %v2268 = vpack.c.b16 %v2228, %v2224
    %v2269 = vpack.c.b16 %v2229, %v2225
    %v2270 = vpack.c.b16 %v2234, %v2230
    %v2271 = vpack.c.b16 %v2235, %v2231
    %v2272 = vpack.c.b16 %v2236, %v2232
    %v2273 = vpack.c.b16 %v2237, %v2233
    %v2274 = vpack.c.b16 %v2242, %v2238
    %v2275 = vpack.c.b16 %v2243, %v2239
    %v2276 = vpack.c.b16 %v2244, %v2240
    %v2277 = vpack.c.b16 %v2245, %v2241
    %2310 = vmatprep.subr.bf16.mxu0 %v2247
    %2311 = vmatpush1.bf16.msra.mxu0 %v2246
    %2312 = vmatprep.subr.bf16.mxu0 %v2251
    %2313 = vmatpush1.bf16.msra.mxu0 %v2250
    %2314 = vmatprep.subr.bf16.mxu0 %v2255
    %2315 = vmatpush1.bf16.msra.mxu0 %v2254
    %2316 = vmatprep.subr.bf16.mxu0 %v2259
    %2317 = vmatpush1.bf16.msra.mxu0 %v2258
    %2318 = vmatprep.subr.bf16.mxu0 %v2263
    %2319 = vmatpush1.bf16.msra.mxu0 %v2262
    %2320 = vmatprep.subr.bf16.mxu0 %v2267
    %2321 = vmatpush1.bf16.msra.mxu0 %v2266
    %2322 = vmatprep.subr.bf16.mxu0 %v2271
    %2323 = vmatpush1.bf16.msra.mxu0 %v2270
    %2324 = vmatprep.subr.bf16.mxu0 %v2275
    %2325 = vmatpush1.bf16.msra.mxu0 %v2274
    %2326 = vmatprep.subr.bf16.mxu0 0
    %2327 = vmatpush1.bf16.msra.mxu0 0
    %2328 = vmatprep.subr.bf16.mxu0 0
    %2329 = vmatpush1.bf16.msra.mxu0 0
    %2330 = vmatprep.subr.bf16.mxu0 0
    %2331 = vmatpush1.bf16.msra.mxu0 0
    %2332 = vmatprep.subr.bf16.mxu0 0
    %2333 = vmatpush1.bf16.msra.mxu0 0
    %2334 = vmatprep.subr.bf16.mxu0 0
    %2335 = vmatpush1.bf16.msra.mxu0 0
    %2336 = vmatprep.subr.bf16.mxu0 0
    %2337 = vmatpush1.bf16.msra.mxu0 0
    %2338 = vmatprep.subr.bf16.mxu0 0
    %2339 = vmatpush1.bf16.msra.mxu0 0
    %2340 = vmatprep.subr.bf16.mxu0 0
    %2341 = vmatpush1.bf16.msra.mxu0 0
    %2342 = vmatprep.mubr.bf16.mxu0 0
    %2343 = vmatmul.mubr.bf16.gmra.mrb[0].mxu0 %v2148
    %v2344 = vpop.f32.mrb[0].mxu0
    %v2345 = vadd.f32 0.0, %v2344
    %v2346 = vpop.f32.mrb[0].mxu0
    %v2347 = vadd.f32 0.0, %v2346
    %v2348 = vpop.f32.mrb[0].mxu0
    %v2349 = vpop.f32.mrb[0].mxu0
    %2350 = vdwg.mxu0
    %2351 = vmatprep.subr.bf16.mxu0 %v2249
    %2352 = vmatpush1.bf16.msra.mxu0 %v2248
    %2353 = vmatprep.subr.bf16.mxu0 %v2253
    %2354 = vmatpush1.bf16.msra.mxu0 %v2252
    %2355 = vmatprep.subr.bf16.mxu0 %v2257
    %2356 = vmatpush1.bf16.msra.mxu0 %v2256
    %2357 = vmatprep.subr.bf16.mxu0 %v2261
    %2358 = vmatpush1.bf16.msra.mxu0 %v2260
    %2359 = vmatprep.subr.bf16.mxu0 %v2265
    %2360 = vmatpush1.bf16.msra.mxu0 %v2264
    %2361 = vmatprep.subr.bf16.mxu0 %v2269
    %2362 = vmatpush1.bf16.msra.mxu0 %v2268
    %2363 = vmatprep.subr.bf16.mxu0 %v2273
    %2364 = vmatpush1.bf16.msra.mxu0 %v2272
    %2365 = vmatprep.subr.bf16.mxu0 %v2277
    %2366 = vmatpush1.bf16.msra.mxu0 %v2276
    %2367 = vmatprep.subr.bf16.mxu0 0
    %2368 = vmatpush1.bf16.msra.mxu0 0
    %2369 = vmatprep.subr.bf16.mxu0 0
    %2370 = vmatpush1.bf16.msra.mxu0 0
    %2371 = vmatprep.subr.bf16.mxu0 0
    %2372 = vmatpush1.bf16.msra.mxu0 0
    %2373 = vmatprep.subr.bf16.mxu0 0
    %2374 = vmatpush1.bf16.msra.mxu0 0
    %2375 = vmatprep.subr.bf16.mxu0 0
    %2376 = vmatpush1.bf16.msra.mxu0 0
    %2377 = vmatprep.subr.bf16.mxu0 0
    %2378 = vmatpush1.bf16.msra.mxu0 0
    %2379 = vmatprep.subr.bf16.mxu0 0
    %2380 = vmatpush1.bf16.msra.mxu0 0
    %2381 = vmatprep.subr.bf16.mxu0 0
    %2382 = vmatpush1.bf16.msra.mxu0 0
    %2383 = vmatprep.mubr.bf16.mxu0 0
    %2384 = vmatmul.mubr.bf16.gmra.mrb[0].mxu0 %v2148
    %v2385 = vpop.f32.mrb[0].mxu0
    %v2386 = vadd.f32 0.0, %v2385
    %v2387 = vpop.f32.mrb[0].mxu0
    %v2388 = vadd.f32 0.0, %v2387
    %v2389 = vpop.f32.mrb[0].mxu0
    %v2390 = vpop.f32.mrb[0].mxu0
    %2391 = vdwg.mxu0
    %v2396 = vrot.slane %v2345, 4
    %v2397 = vrot.slane %v2347, 4
    %v2398 = vrot.slane %v2386, 4
    %v2399 = vrot.slane %v2388, 4
    %v2404 = vadd.f32 %v2110, %v2396
    %v2405 = vadd.f32 %v2111, %v2397
    %v2406 = vadd.f32 %v2112, %v2398
    %v2407 = vadd.f32 %v2113, %v2399
    %v2408 = vxor.u32 %v2404, 2147483648
    %v2409 = vmul.f32 %v2408, 1.442695
    %v2410 = vpow.pop %v2409
    %v2411 = vadd.f32 %v2410, 1.0
    %v2412 = vrcp.pop %v2411
    %v2413 = vmul.f32 1.0, %v2412
    %v2414 = vxor.u32 %v2405, 2147483648
    %v2415 = vmul.f32 %v2414, 1.442695
    %v2416 = vpow.pop %v2415
    %v2417 = vadd.f32 %v2416, 1.0
    %v2418 = vrcp.pop %v2417
    %v2419 = vmul.f32 1.0, %v2418
    %v2420 = vtanh.pop %v2406
    %v2421 = vxor.u32 %v2407, 2147483648
    %v2422 = vmul.f32 %v2421, 1.442695
    %v2423 = vpow.pop %v2422
    %v2424 = vadd.f32 %v2423, 1.0
    %v2425 = vrcp.pop %v2424
    %v2426 = vmul.f32 1.0, %v2425
    %v2428 = vrot.slane %v2106, 6
    %v2430 = vmul.f32 %v2419, %v2428
    %v2431 = vmul.f32 %v2413, %v2420
    %v2432 = vadd.f32 %v2430, %v2431
    %v2433 = vtanh.pop %v2432
    %v2434 = vmul.f32 %v2426, %v2433
    %2435 = vst [vmem:[#allocation3 + $0x8] sm:$0x30] %v2434
    %v2436 = vld [vmem:[#allocation2 + $0x20] sm:$0xc0]
    %v2437 = vld [vmem:[#allocation2 + $0x28] sm:$0xc0]
    %v2438 = vld [vmem:[#allocation2 + $0x30] sm:$0xc0]
    %v2439 = vld [vmem:[#allocation2 + $0x38] sm:$0xc0]
    %v2440 = vpack.c.bf16 %v2434, %v2434
    %v2441 = vld [vmem:[#allocation5] sm:$0xff]
    %v2442 = vld [vmem:[#allocation5 + $0x8] sm:$0xff]
    %v2443 = vld [vmem:[#allocation5 + $0x10] sm:$0xff]
    %v2444 = vld [vmem:[#allocation5 + $0x18] sm:$0xff]
    %v2445 = vld [vmem:[#allocation5 + $0x20] sm:$0xff]
    %v2446 = vld [vmem:[#allocation5 + $0x28] sm:$0xff]
    %v2447 = vld [vmem:[#allocation5 + $0x30] sm:$0xff]
    %v2448 = vld [vmem:[#allocation5 + $0x38] sm:$0xff]
    %v2449 = vld [vmem:[#allocation5 + $0x40] sm:$0xff]
    %v2450 = vld [vmem:[#allocation5 + $0x48] sm:$0xff]
    %v2451 = vld [vmem:[#allocation5 + $0x50] sm:$0xff]
    %v2452 = vld [vmem:[#allocation5 + $0x58] sm:$0xff]
    %v2453 = vld [vmem:[#allocation5 + $0x60] sm:$0xff]
    %v2454 = vld [vmem:[#allocation5 + $0x68] sm:$0xff]
    %v2455 = vld [vmem:[#allocation5 + $0x70] sm:$0xff]
    %v2456 = vld [vmem:[#allocation5 + $0x78] sm:$0xff]
    %v2457 = vld [vmem:[#allocation5 + $0x80] sm:$0xff]
    %v2458 = vld [vmem:[#allocation5 + $0x88] sm:$0xff]
    %v2459 = vld [vmem:[#allocation5 + $0x90] sm:$0xff]
    %v2460 = vld [vmem:[#allocation5 + $0x98] sm:$0xff]
    %v2461 = vld [vmem:[#allocation5 + $0xa0] sm:$0xff]
    %v2462 = vld [vmem:[#allocation5 + $0xa8] sm:$0xff]
    %v2463 = vld [vmem:[#allocation5 + $0xb0] sm:$0xff]
    %v2464 = vld [vmem:[#allocation5 + $0xb8] sm:$0xff]
    %v2465 = vld [vmem:[#allocation5 + $0xc0] sm:$0xff]
    %v2466 = vld [vmem:[#allocation5 + $0xc8] sm:$0xff]
    %v2467 = vld [vmem:[#allocation5 + $0xd0] sm:$0xff]
    %v2468 = vld [vmem:[#allocation5 + $0xd8] sm:$0xff]
    %v2469 = vld [vmem:[#allocation5 + $0xe0] sm:$0xff]
    %v2470 = vld [vmem:[#allocation5 + $0xe8] sm:$0xff]
    %v2471 = vld [vmem:[#allocation5 + $0xf0] sm:$0xff]
    %v2472 = vld [vmem:[#allocation5 + $0xf8] sm:$0xff]
    %v2474 = vrot.slane %v2440, 2
    %v2508 = vunpack.c.l.b16 %v2441
    %v2509 = vunpack.c.h.b16 %v2441
    %v2510 = vunpack.c.l.b16 %v2442
    %v2511 = vunpack.c.h.b16 %v2442
    %v2512 = vunpack.c.l.b16 %v2443
    %v2513 = vunpack.c.h.b16 %v2443
    %v2514 = vunpack.c.l.b16 %v2444
    %v2515 = vunpack.c.h.b16 %v2444
    %v2516 = vunpack.c.l.b16 %v2445
    %v2517 = vunpack.c.h.b16 %v2445
    %v2518 = vunpack.c.l.b16 %v2446
    %v2519 = vunpack.c.h.b16 %v2446
    %v2520 = vunpack.c.l.b16 %v2447
    %v2521 = vunpack.c.h.b16 %v2447
    %v2522 = vunpack.c.l.b16 %v2448
    %v2523 = vunpack.c.h.b16 %v2448
    %v2524 = vunpack.c.l.b16 %v2449
    %v2525 = vunpack.c.h.b16 %v2449
    %v2526 = vunpack.c.l.b16 %v2450
    %v2527 = vunpack.c.h.b16 %v2450
    %v2528 = vunpack.c.l.b16 %v2451
    %v2529 = vunpack.c.h.b16 %v2451
    %v2530 = vunpack.c.l.b16 %v2452
    %v2531 = vunpack.c.h.b16 %v2452
    %v2532 = vunpack.c.l.b16 %v2453
    %v2533 = vunpack.c.h.b16 %v2453
    %v2534 = vunpack.c.l.b16 %v2454
    %v2535 = vunpack.c.h.b16 %v2454
    %v2536 = vunpack.c.l.b16 %v2455
    %v2537 = vunpack.c.h.b16 %v2455
    %v2538 = vunpack.c.l.b16 %v2456
    %v2539 = vunpack.c.h.b16 %v2456
    %v2540 = vunpack.c.l.b16 %v2457
    %v2541 = vunpack.c.h.b16 %v2457
    %v2542 = vunpack.c.l.b16 %v2458
    %v2543 = vunpack.c.h.b16 %v2458
    %v2544 = vunpack.c.l.b16 %v2459
    %v2545 = vunpack.c.h.b16 %v2459
    %v2546 = vunpack.c.l.b16 %v2460
    %v2547 = vunpack.c.h.b16 %v2460
    %v2548 = vunpack.c.l.b16 %v2461
    %v2549 = vunpack.c.h.b16 %v2461
    %v2550 = vunpack.c.l.b16 %v2462
    %v2551 = vunpack.c.h.b16 %v2462
    %v2552 = vunpack.c.l.b16 %v2463
    %v2553 = vunpack.c.h.b16 %v2463
    %v2554 = vunpack.c.l.b16 %v2464
    %v2555 = vunpack.c.h.b16 %v2464
    %v2556 = vunpack.c.l.b16 %v2465
    %v2557 = vunpack.c.h.b16 %v2465
    %v2558 = vunpack.c.l.b16 %v2466
    %v2559 = vunpack.c.h.b16 %v2466
    %v2560 = vunpack.c.l.b16 %v2467
    %v2561 = vunpack.c.h.b16 %v2467
    %v2562 = vunpack.c.l.b16 %v2468
    %v2563 = vunpack.c.h.b16 %v2468
    %v2564 = vunpack.c.l.b16 %v2469
    %v2565 = vunpack.c.h.b16 %v2469
    %v2566 = vunpack.c.l.b16 %v2470
    %v2567 = vunpack.c.h.b16 %v2470
    %v2568 = vunpack.c.l.b16 %v2471
    %v2569 = vunpack.c.h.b16 %v2471
    %v2570 = vunpack.c.l.b16 %v2472
    %v2571 = vunpack.c.h.b16 %v2472
    %v2572 = vpack.c.b16 %v2512, %v2508
    %v2573 = vpack.c.b16 %v2513, %v2509
    %v2574 = vpack.c.b16 %v2514, %v2510
    %v2575 = vpack.c.b16 %v2515, %v2511
    %v2576 = vpack.c.b16 %v2520, %v2516
    %v2577 = vpack.c.b16 %v2521, %v2517
    %v2578 = vpack.c.b16 %v2522, %v2518
    %v2579 = vpack.c.b16 %v2523, %v2519
    %v2580 = vpack.c.b16 %v2528, %v2524
    %v2581 = vpack.c.b16 %v2529, %v2525
    %v2582 = vpack.c.b16 %v2530, %v2526
    %v2583 = vpack.c.b16 %v2531, %v2527
    %v2584 = vpack.c.b16 %v2536, %v2532
    %v2585 = vpack.c.b16 %v2537, %v2533
    %v2586 = vpack.c.b16 %v2538, %v2534
    %v2587 = vpack.c.b16 %v2539, %v2535
    %v2588 = vpack.c.b16 %v2544, %v2540
    %v2589 = vpack.c.b16 %v2545, %v2541
    %v2590 = vpack.c.b16 %v2546, %v2542
    %v2591 = vpack.c.b16 %v2547, %v2543
    %v2592 = vpack.c.b16 %v2552, %v2548
    %v2593 = vpack.c.b16 %v2553, %v2549
    %v2594 = vpack.c.b16 %v2554, %v2550
    %v2595 = vpack.c.b16 %v2555, %v2551
    %v2596 = vpack.c.b16 %v2560, %v2556
    %v2597 = vpack.c.b16 %v2561, %v2557
    %v2598 = vpack.c.b16 %v2562, %v2558
    %v2599 = vpack.c.b16 %v2563, %v2559
    %v2600 = vpack.c.b16 %v2568, %v2564
    %v2601 = vpack.c.b16 %v2569, %v2565
    %v2602 = vpack.c.b16 %v2570, %v2566
    %v2603 = vpack.c.b16 %v2571, %v2567
    %2636 = vmatprep.subr.bf16.mxu0 %v2573
    %2637 = vmatpush1.bf16.msra.mxu0 %v2572
    %2638 = vmatprep.subr.bf16.mxu0 %v2577
    %2639 = vmatpush1.bf16.msra.mxu0 %v2576
    %2640 = vmatprep.subr.bf16.mxu0 %v2581
    %2641 = vmatpush1.bf16.msra.mxu0 %v2580
    %2642 = vmatprep.subr.bf16.mxu0 %v2585
    %2643 = vmatpush1.bf16.msra.mxu0 %v2584
    %2644 = vmatprep.subr.bf16.mxu0 %v2589
    %2645 = vmatpush1.bf16.msra.mxu0 %v2588
    %2646 = vmatprep.subr.bf16.mxu0 %v2593
    %2647 = vmatpush1.bf16.msra.mxu0 %v2592
    %2648 = vmatprep.subr.bf16.mxu0 %v2597
    %2649 = vmatpush1.bf16.msra.mxu0 %v2596
    %2650 = vmatprep.subr.bf16.mxu0 %v2601
    %2651 = vmatpush1.bf16.msra.mxu0 %v2600
    %2652 = vmatprep.subr.bf16.mxu0 0
    %2653 = vmatpush1.bf16.msra.mxu0 0
    %2654 = vmatprep.subr.bf16.mxu0 0
    %2655 = vmatpush1.bf16.msra.mxu0 0
    %2656 = vmatprep.subr.bf16.mxu0 0
    %2657 = vmatpush1.bf16.msra.mxu0 0
    %2658 = vmatprep.subr.bf16.mxu0 0
    %2659 = vmatpush1.bf16.msra.mxu0 0
    %2660 = vmatprep.subr.bf16.mxu0 0
    %2661 = vmatpush1.bf16.msra.mxu0 0
    %2662 = vmatprep.subr.bf16.mxu0 0
    %2663 = vmatpush1.bf16.msra.mxu0 0
    %2664 = vmatprep.subr.bf16.mxu0 0
    %2665 = vmatpush1.bf16.msra.mxu0 0
    %2666 = vmatprep.subr.bf16.mxu0 0
    %2667 = vmatpush1.bf16.msra.mxu0 0
    %2668 = vmatprep.mubr.bf16.mxu0 0
    %2669 = vmatmul.mubr.bf16.gmra.mrb[0].mxu0 %v2474
    %v2670 = vpop.f32.mrb[0].mxu0
    %v2671 = vadd.f32 0.0, %v2670
    %v2672 = vpop.f32.mrb[0].mxu0
    %v2673 = vadd.f32 0.0, %v2672
    %v2674 = vpop.f32.mrb[0].mxu0
    %v2675 = vpop.f32.mrb[0].mxu0
    %2676 = vdwg.mxu0
    %2677 = vmatprep.subr.bf16.mxu0 %v2575
    %2678 = vmatpush1.bf16.msra.mxu0 %v2574
    %2679 = vmatprep.subr.bf16.mxu0 %v2579
    %2680 = vmatpush1.bf16.msra.mxu0 %v2578
    %2681 = vmatprep.subr.bf16.mxu0 %v2583
    %2682 = vmatpush1.bf16.msra.mxu0 %v2582
    %2683 = vmatprep.subr.bf16.mxu0 %v2587
    %2684 = vmatpush1.bf16.msra.mxu0 %v2586
    %2685 = vmatprep.subr.bf16.mxu0 %v2591
    %2686 = vmatpush1.bf16.msra.mxu0 %v2590
    %2687 = vmatprep.subr.bf16.mxu0 %v2595
    %2688 = vmatpush1.bf16.msra.mxu0 %v2594
    %2689 = vmatprep.subr.bf16.mxu0 %v2599
    %2690 = vmatpush1.bf16.msra.mxu0 %v2598
    %2691 = vmatprep.subr.bf16.mxu0 %v2603
    %2692 = vmatpush1.bf16.msra.mxu0 %v2602
    %2693 = vmatprep.subr.bf16.mxu0 0
    %2694 = vmatpush1.bf16.msra.mxu0 0
    %2695 = vmatprep.subr.bf16.mxu0 0
    %2696 = vmatpush1.bf16.msra.mxu0 0
    %2697 = vmatprep.subr.bf16.mxu0 0
    %2698 = vmatpush1.bf16.msra.mxu0 0
    %2699 = vmatprep.subr.bf16.mxu0 0
    %2700 = vmatpush1.bf16.msra.mxu0 0
    %2701 = vmatprep.subr.bf16.mxu0 0
    %2702 = vmatpush1.bf16.msra.mxu0 0
    %2703 = vmatprep.subr.bf16.mxu0 0
    %2704 = vmatpush1.bf16.msra.mxu0 0
    %2705 = vmatprep.subr.bf16.mxu0 0
    %2706 = vmatpush1.bf16.msra.mxu0 0
    %2707 = vmatprep.subr.bf16.mxu0 0
    %2708 = vmatpush1.bf16.msra.mxu0 0
    %2709 = vmatprep.mubr.bf16.mxu0 0
    %2710 = vmatmul.mubr.bf16.gmra.mrb[0].mxu0 %v2474
    %v2711 = vpop.f32.mrb[0].mxu0
    %v2712 = vadd.f32 0.0, %v2711
    %v2713 = vpop.f32.mrb[0].mxu0
    %v2714 = vadd.f32 0.0, %v2713
    %v2715 = vpop.f32.mrb[0].mxu0
    %v2716 = vpop.f32.mrb[0].mxu0
    %2717 = vdwg.mxu0
    %v2722 = vrot.slane %v2671, 2
    %v2723 = vrot.slane %v2673, 2
    %v2724 = vrot.slane %v2712, 2
    %v2725 = vrot.slane %v2714, 2
    %v2730 = vadd.f32 %v2436, %v2722
    %v2731 = vadd.f32 %v2437, %v2723
    %v2732 = vadd.f32 %v2438, %v2724
    %v2733 = vadd.f32 %v2439, %v2725
    %v2734 = vxor.u32 %v2730, 2147483648
    %v2735 = vmul.f32 %v2734, 1.442695
    %v2736 = vpow.pop %v2735
    %v2737 = vadd.f32 %v2736, 1.0
    %v2738 = vrcp.pop %v2737
    %v2739 = vmul.f32 1.0, %v2738
    %v2740 = vxor.u32 %v2731, 2147483648
    %v2741 = vmul.f32 %v2740, 1.442695
    %v2742 = vpow.pop %v2741
    %v2743 = vadd.f32 %v2742, 1.0
    %v2744 = vrcp.pop %v2743
    %v2745 = vmul.f32 1.0, %v2744
    %v2746 = vtanh.pop %v2732
    %v2747 = vxor.u32 %v2733, 2147483648
    %v2748 = vmul.f32 %v2747, 1.442695
    %v2749 = vpow.pop %v2748
    %v2750 = vadd.f32 %v2749, 1.0
    %v2751 = vrcp.pop %v2750
    %v2752 = vmul.f32 1.0, %v2751
    %v2754 = vrot.slane %v2432, 6
    %v2756 = vmul.f32 %v2745, %v2754
    %v2757 = vmul.f32 %v2739, %v2746
    %v2758 = vadd.f32 %v2756, %v2757
    %v2759 = vtanh.pop %v2758
    %v2760 = vmul.f32 %v2752, %v2759
    %2761 = vst [vmem:[#allocation3 + $0x8] sm:$0xc0] %v2760
    %v2762 = vld [vmem:[#allocation3] sm:$0xff]
    %v2763 = vld [vmem:[#allocation3 + $0x8] sm:$0xff]
    %v2764 = vld [vmem:[%s4] sm:$0xff]
    %v2765 = vld [vmem:[%s4 + $0x8] sm:$0xff]
    %v2766 = vld [vmem:[%s4 + $0x10] sm:$0xff]
    %v2767 = vld [vmem:[%s4 + $0x18] sm:$0xff]
    %v2768 = vld [vmem:[%s4 + $0x20] sm:$0xff]
    %v2769 = vld [vmem:[%s4 + $0x28] sm:$0xff]
    %v2770 = vld [vmem:[%s4 + $0x30] sm:$0xff]
    %v2771 = vld [vmem:[%s4 + $0x38] sm:$0xff]
    %v2772 = vld [vmem:[%s4 + $0x40] sm:$0xff]
    %v2773 = vld [vmem:[%s4 + $0x48] sm:$0xff]
    %v2774 = vld [vmem:[%s4 + $0x50] sm:$0xff]
    %v2775 = vld [vmem:[%s4 + $0x58] sm:$0xff]
    %v2776 = vld [vmem:[%s4 + $0x60] sm:$0xff]
    %v2777 = vld [vmem:[%s4 + $0x68] sm:$0xff]
    %v2778 = vld [vmem:[%s4 + $0x70] sm:$0xff]
    %v2779 = vld [vmem:[%s4 + $0x78] sm:$0xff]
    %v2780 = vld [vmem:[#allocation4] sm:$0x1]
    %v2782 = vlaneseq
    %v2783 = vshrl.u32 %v2782, 7
    %v2784 = vsub.s32 0, %v2783
    %v2785 = vrot.slane %v2780, %v2784
    %2787 = vmatprep.subr.mxu0 0.0
    %2788 = vmatpush1.msra.mxu0 %v2764
    %2789 = vmatprep.subr.mxu0 0.0
    %2790 = vmatpush1.msra.mxu0 %v2765
    %2791 = vmatprep.subr.mxu0 0.0
    %2792 = vmatpush1.msra.mxu0 %v2766
    %2793 = vmatprep.subr.mxu0 0.0
    %2794 = vmatpush1.msra.mxu0 %v2767
    %2795 = vmatprep.subr.mxu0 0.0
    %2796 = vmatpush1.msra.mxu0 %v2768
    %2797 = vmatprep.subr.mxu0 0.0
    %2798 = vmatpush1.msra.mxu0 %v2769
    %2799 = vmatprep.subr.mxu0 0.0
    %2800 = vmatpush1.msra.mxu0 %v2770
    %2801 = vmatprep.subr.mxu0 0.0
    %2802 = vmatpush1.msra.mxu0 %v2771
    %2803 = vmatprep.subr.mxu0 0.0
    %2804 = vmatpush1.msra.mxu0 %v2772
    %2805 = vmatprep.subr.mxu0 0.0
    %2806 = vmatpush1.msra.mxu0 %v2773
    %2807 = vmatprep.subr.mxu0 0.0
    %2808 = vmatpush1.msra.mxu0 %v2774
    %2809 = vmatprep.subr.mxu0 0.0
    %2810 = vmatpush1.msra.mxu0 %v2775
    %2811 = vmatprep.subr.mxu0 0.0
    %2812 = vmatpush1.msra.mxu0 %v2776
    %2813 = vmatprep.subr.mxu0 0.0
    %2814 = vmatpush1.msra.mxu0 %v2777
    %2815 = vmatprep.subr.mxu0 0.0
    %2816 = vmatpush1.msra.mxu0 %v2778
    %2817 = vmatprep.subr.mxu0 0.0
    %2818 = vmatpush1.msra.mxu0 %v2779
    %2819 = vmatprep.subr.mxu0 0.0
    %2820 = vmatpush1.msra.mxu0 0.0
    %2821 = vmatprep.subr.mxu0 0.0
    %2822 = vmatpush1.msra.mxu0 0.0
    %2823 = vmatprep.subr.mxu0 0.0
    %2824 = vmatpush1.msra.mxu0 0.0
    %2825 = vmatprep.subr.mxu0 0.0
    %2826 = vmatpush1.msra.mxu0 0.0
    %2827 = vmatprep.subr.mxu0 0.0
    %2828 = vmatpush1.msra.mxu0 0.0
    %2829 = vmatprep.subr.mxu0 0.0
    %2830 = vmatpush1.msra.mxu0 0.0
    %2831 = vmatprep.subr.mxu0 0.0
    %2832 = vmatpush1.msra.mxu0 0.0
    %2833 = vmatprep.subr.mxu0 0.0
    %2834 = vmatpush1.msra.mxu0 0.0
    %2835 = vmatprep.subr.mxu0 0.0
    %2836 = vmatpush1.msra.mxu0 0.0
    %2837 = vmatprep.subr.mxu0 0.0
    %2838 = vmatpush1.msra.mxu0 0.0
    %2839 = vmatprep.subr.mxu0 0.0
    %2840 = vmatpush1.msra.mxu0 0.0
    %2841 = vmatprep.subr.mxu0 0.0
    %2842 = vmatpush1.msra.mxu0 0.0
    %2843 = vmatprep.subr.mxu0 0.0
    %2844 = vmatpush1.msra.mxu0 0.0
    %2845 = vmatprep.subr.mxu0 0.0
    %2846 = vmatpush1.msra.mxu0 0.0
    %2847 = vmatprep.subr.mxu0 0.0
    %2848 = vmatpush1.msra.mxu0 0.0
    %2849 = vmatprep.subr.mxu0 0.0
    %2850 = vmatpush1.msra.mxu0 0.0
    %2851 = vmatprep.mubr.f32.mxu0 0.0
    %2852 = vmatmul.mubr.f32.gmra.mrb[0].mxu0 %v2762
    %v2853 = vpop.f32.mrb[0].mxu0
    %v2854 = vadd.f32 %v2785, %v2853
    %v2855 = vpop.f32.mrb[0].mxu0
    %2856 = vmatprep.mubr.f32.mxu0 0.0
    %2857 = vmatmul.mubr.f32.gmra.mrb[0].mxu0 %v2763
    %v2858 = vpop.f32.mrb[0].mxu0
    %v2859 = vadd.f32 %v2785, %v2858
    %v2860 = vpop.f32.mrb[0].mxu0
    %2861 = vdwg.mxu0
    %vm2862 = vcmask 7168
    %2863 = vst.msk [vmem:[%s6] sm:$0xff] %vm2862, %v2854
    %2864 = vst.msk [vmem:[%s6 + $0x8] sm:$0xff] %vm2862, %v2859
    // Predicated region
    $region30: #{tpu_custom_call.1} parent=1 // pred_check
      _
    $region31: #{tpu_custom_call.1} parent=1 // pred_check_branch
      %2866 = sbr.rel (0) target = $region33
    $region32: #{tpu_custom_call.1} parent=1 // pred_region
      _
    $region33: #{tpu_custom_call.1} parent=1 // pred_fallthru
      _
    // Predicated region
    $region34: #{tpu_custom_call.1} parent=1 // pred_check
      _
    $region35: #{tpu_custom_call.1} parent=1 // pred_check_branch
      %2868 = sbr.rel (0) target = $region37
    $region36: #{tpu_custom_call.1} parent=1 // pred_region
      _
    $region37: #{tpu_custom_call.1} parent=1 // pred_fallthru
      _
    %2869 = vsyncpa [#allocation6], 1

</llo_original>
